<compile_context>
chip_gen: v5e
topology: v5e:2x2
jax: 0.10.0
libtpu: 0.0.40
codegen_flags: <defaults>
</compile_context>

<pallas_src>
import jax
import jax.numpy as jnp
from jax.experimental import pallas as pl
from jax.experimental.pallas import tpu as pltpu

IN_DIM = 512
HID1 = 256
HID2 = 64
HID2_PAD = 128     # zero-pad hidden2 64 -> 128: full-lane vregs, full MXU columns
OUT_DIM = 1
MINIBATCH = 256    # per-image instance count assumed by InstanceLabelResizeLayer


def _instance_da_kernel(x_ref, w1_ref, b1_ref, w2_ref, b2_ref, w3_ref, b3_ref,
                        o_ref):
    # grad_reverse is identity forward; dropout is identity at inference.
    # In-kernel bf16 cast of the x tile (near-free VPU work); x arrives in its
    # producer dtype so the wrapper burns no extra HBM pass on the cast.
    xb = x_ref[...].astype(jnp.bfloat16)
    # fc1: [tile_m,512]bf16 @ [512,256]bf16 -> f32 accumulation on the MXU.
    h1 = jnp.dot(xb, w1_ref[...], preferred_element_type=jnp.float32)
    h1 = jnp.maximum(h1 + b1_ref[...], 0.0)        # bias/ReLU in f32 (v5e has no bf16 VPU)
    # fc2: [tile_m,256]bf16 @ [256,128]bf16 (HID2 zero-padded to 128) -> f32.
    h2 = jnp.dot(h1.astype(jnp.bfloat16), w2_ref[...],
                 preferred_element_type=jnp.float32)
    h2 = jnp.maximum(h2 + b2_ref[...], 0.0)
    # classifier (64 -> 1): VPU broadcast-mul against the zero-padded f32 w3
    # row + lane reduce.  Avoids both the full XLU transpose (vector-extended
    # slot contention with vmatmul pushes) and a degenerate 4th MXU pass.
    logit = jnp.sum(h2 * w3_ref[...], axis=-1, keepdims=True) + b3_ref[0]
    o_ref[...] = jax.nn.sigmoid(logit).astype(o_ref.dtype)


def instance_da_forward(x, kernel_params, *, tile_m=None):
    """x: [N, 512] float. Returns sigmoid domain scores [N, 1] float32."""
    N, D = x.shape
    assert D == IN_DIM
    w1, b1, w2, b2, w3, b3 = kernel_params

    if tile_m is None:
        # Big tiles amortize the ~0.35us per-grid-step overhead.  Prefer >=4
        # grid steps when N allows large tiles (keeps the pipeline full and
        # gives both v7x TensorCores >=2 steps each), otherwise keep >=2
        # steps; floor at 128 rows.
        tile_m = 1024
        while tile_m > 512 and N < 4 * tile_m:
            tile_m //= 2
        while tile_m > 128 and N < 2 * tile_m:
            tile_m //= 2

    num_tiles = pl.cdiv(N, tile_m)

    out = pl.pallas_call(
        _instance_da_kernel,
        out_shape=jax.ShapeDtypeStruct((N, OUT_DIM), jnp.float32),
        grid_spec=pltpu.PrefetchScalarGridSpec(
            num_scalar_prefetch=0,
            grid=(num_tiles,),
            in_specs=[
                # x tile in its native dtype; ragged tail handled by the cdiv
                # grid (tail rows compute on stale buffer contents but only
                # in-bounds rows are written back).
                pl.BlockSpec((tile_m, IN_DIM), lambda i: (i, 0)),
                # Weights/biases: constant index_map so they stay resident in
                # VMEM across the whole grid (no re-DMA per step).
                pl.BlockSpec((IN_DIM, HID1), lambda i: (0, 0)),      # W1 (bf16)
                pl.BlockSpec((1, HID1), lambda i: (0, 0)),           # b1 (f32)
                pl.BlockSpec((HID1, HID2_PAD), lambda i: (0, 0)),    # W2 padded (bf16)
                pl.BlockSpec((1, HID2_PAD), lambda i: (0, 0)),       # b2 padded (f32)
                pl.BlockSpec((1, HID2_PAD), lambda i: (0, 0)),       # w3 row padded (f32)
                pl.BlockSpec(memory_space=pltpu.MemorySpace.SMEM),   # b3 scalar (f32)
            ],
            out_specs=pl.BlockSpec((tile_m, OUT_DIM), lambda i: (i, 0)),
        ),
        compiler_params=pltpu.CompilerParams(
            dimension_semantics=("parallel",),
            # Headroom above v5e's 16 MiB scoped default; well under every
            # chip's physical VMEM (incl. v7x's 64 MiB).
            vmem_limit_bytes=32 * 1024 * 1024),
    )(x, w1, b1, w2, b2, w3, b3)

    return out


def prepare_params(torch_params):
    """nn.Linear-layout params ([out,in] weights, [out] biases) -> kernel layout:
    transpose to [in,out], zero-pad the 64-wide hidden dim to 128, cast the
    MXU weight operands (W1, W2) to bf16; w3 stays an f32 row, b3 an f32 scalar."""
    w1, b1, w2, b2, w3, b3 = torch_params
    w1k = w1.T.astype(jnp.bfloat16)                                           # [512, 256]
    b1k = b1.reshape(1, HID1).astype(jnp.float32)
    w2k = jnp.pad(w2.T, ((0, 0), (0, HID2_PAD - HID2))).astype(jnp.bfloat16)  # [256, 128]
    b2k = jnp.pad(b2.reshape(1, HID2),
                  ((0, 0), (0, HID2_PAD - HID2))).astype(jnp.float32)         # [1, 128]
    w3k = jnp.pad(w3.reshape(OUT_DIM, HID2),
                  ((0, 0), (0, HID2_PAD - HID2))).astype(jnp.float32)         # [1, 128] row
    b3k = b3.reshape(OUT_DIM).astype(jnp.float32)                             # [1] (SMEM)
    return (w1k, b1k, w2k, b2k, w3k, b3k)


def instance_label_resize(x, need_backprop):
    """Plain-JAX glue mirroring InstanceLabelResizeLayer: row i gets
    need_backprop[i // MINIBATCH] (rows beyond label coverage stay 1.0)."""
    n = x.shape[0]
    img_idx = jnp.arange(n) // MINIBATCH
    img_idx_c = jnp.clip(img_idx, 0, need_backprop.shape[0] - 1)
    lbl = need_backprop[img_idx_c]
    valid = img_idx < need_backprop.shape[0]
    lbl = jnp.where(valid, lbl, 1.0)
    return lbl.reshape(n, 1).astype(jnp.float32)


def init_params(key):
    """Deterministic synthetic params in PyTorch nn.Linear layout."""
    k1, k2, k3, k4, k5, k6 = jax.random.split(key, 6)
    w1 = jax.random.normal(k1, (HID1, IN_DIM), jnp.float32) * (1.0 / IN_DIM) ** 0.5
    b1 = jax.random.normal(k2, (HID1,), jnp.float32) * 0.01
    w2 = jax.random.normal(k3, (HID2, HID1), jnp.float32) * (1.0 / HID1) ** 0.5
    b2 = jax.random.normal(k4, (HID2,), jnp.float32) * 0.01
    w3 = jax.random.normal(k5, (OUT_DIM, HID2), jnp.float32) * (1.0 / HID2) ** 0.5
    b3 = jax.random.normal(k6, (OUT_DIM,), jnp.float32) * 0.01
    return (w1, b1, w2, b2, w3, b3)


if __name__ == "__main__":
    key = jax.random.PRNGKey(0)
    kp, kx, kb = jax.random.split(key, 3)

    torch_params = init_params(kp)
    kparams = prepare_params(torch_params)

    N = 512                        # instance (RoI) features: 2 images x 256
    x = jax.random.normal(kx, (N, IN_DIM), jnp.float32)
    need_backprop = jax.random.bernoulli(kb, 0.5, (2,)).astype(jnp.float32)

    scores = instance_da_forward(x, kparams)
    label = instance_label_resize(scores, need_backprop)
    scores, label = jax.block_until_ready((scores, label))

    # References.
    w1, b1, w2, b2, w3, b3 = torch_params

    # (a) bf16-matched reference (same casts / f32 accumulation as the kernel).
    xb = x.astype(jnp.bfloat16)
    h1b = jnp.maximum(
        jnp.dot(xb, w1.T.astype(jnp.bfloat16),
                preferred_element_type=jnp.float32) + b1, 0.0)
    h2b = jnp.maximum(
        jnp.dot(h1b.astype(jnp.bfloat16), w2.T.astype(jnp.bfloat16),
                preferred_element_type=jnp.float32) + b2, 0.0)
    logit_b = jnp.sum(h2b * w3.reshape(1, HID2), axis=-1, keepdims=True) + b3
    ref_bf16 = jax.nn.sigmoid(logit_b)

    # (b) full-f32 reference (PyTorch eval-mode semantics), loose tolerance.
    h1f = jnp.maximum(x @ w1.T + b1, 0.0)
    h2f = jnp.maximum(h1f @ w2.T + b2, 0.0)
    ref_f32 = jax.nn.sigmoid(h2f @ w3.T + b3)

    assert scores.shape == (N, 1) and label.shape == (N, 1)
    assert jnp.allclose(scores, ref_bf16, atol=2e-3, rtol=2e-3)
    assert jnp.allclose(scores, ref_f32, atol=5e-2, rtol=5e-2)

    print("KERNEL_OK")
</pallas_src>

<mosaic_0001>
module attributes {stable_mosaic.version = 11 : i64} {
  func.func @_instance_da_kernel(%arg0: i32, %arg1: memref<256x512xf32, #tpu.memory_space<vmem>>, %arg2: memref<512x256xbf16, #tpu.memory_space<vmem>>, %arg3: memref<1x256xf32, #tpu.memory_space<vmem>>, %arg4: memref<256x128xbf16, #tpu.memory_space<vmem>>, %arg5: memref<1x128xf32, #tpu.memory_space<vmem>>, %arg6: memref<1x128xf32, #tpu.memory_space<vmem>>, %arg7: memref<1xf32, #tpu.memory_space<smem>>, %arg8: memref<256x1xf32, #tpu.memory_space<vmem>>) attributes {dimension_semantics = [#tpu.dimension_semantics<parallel>], iteration_bounds = array<i64: 2>, scalar_prefetch = 0 : i64, scratch_operands = 0 : i64, tpu.core_type = #tpu.core_type<tc>, window_params = [{transform_indices = @transform_0, window_bounds = array<i64: 256, 512>}, {pipeline_mode = #tpu.pipeline_mode<synchronous>, transform_indices = @transform_1, window_bounds = array<i64: 512, 256>}, {pipeline_mode = #tpu.pipeline_mode<synchronous>, transform_indices = @transform_2, window_bounds = array<i64: 1, 256>}, {pipeline_mode = #tpu.pipeline_mode<synchronous>, transform_indices = @transform_3, window_bounds = array<i64: 256, 128>}, {pipeline_mode = #tpu.pipeline_mode<synchronous>, transform_indices = @transform_4, window_bounds = array<i64: 1, 128>}, {pipeline_mode = #tpu.pipeline_mode<synchronous>, transform_indices = @transform_5, window_bounds = array<i64: 1, 128>}, {transform_indices = @transform_6, window_bounds = array<i64: 1>}, {transform_indices = @transform_7, window_bounds = array<i64: 256, 1>}]} {
    %c0 = arith.constant 0 : index
    %c0_0 = arith.constant 0 : index
    %0 = vector.load %arg1[%c0, %c0_0] : memref<256x512xf32, #tpu.memory_space<vmem>>, vector<256x512xf32>
    %1 = arith.truncf %0 : vector<256x512xf32> to vector<256x512xbf16>
    %c0_1 = arith.constant 0 : index
    %c0_2 = arith.constant 0 : index
    %2 = vector.load %arg2[%c0_1, %c0_2] : memref<512x256xbf16, #tpu.memory_space<vmem>>, vector<512x256xbf16>
    %cst = arith.constant dense<0.000000e+00> : vector<256x256xf32>
    %3 = tpu.matmul %1, %2, %cst {dimension_numbers = #tpu.dot_dimension_numbers<[1], [0], [0], [1], [0, 0, 1, 1], [], []>} : vector<256x512xbf16>, vector<512x256xbf16>, vector<256x256xf32> -> vector<256x256xf32>
    %c0_3 = arith.constant 0 : index
    %c0_4 = arith.constant 0 : index
    %4 = vector.load %arg3[%c0_3, %c0_4] : memref<1x256xf32, #tpu.memory_space<vmem>>, vector<1x256xf32>
    %5 = vector.broadcast %4 : vector<1x256xf32> to vector<256x256xf32>
    %6 = arith.addf %3, %5 : vector<256x256xf32>
    %cst_5 = arith.constant 0.000000e+00 : f32
    %7 = vector.broadcast %cst_5 : f32 to vector<256x256xf32>
    %8 = arith.maximumf %6, %7 : vector<256x256xf32>
    %9 = arith.truncf %8 : vector<256x256xf32> to vector<256x256xbf16>
    %c0_6 = arith.constant 0 : index
    %c0_7 = arith.constant 0 : index
    %10 = vector.load %arg4[%c0_6, %c0_7] : memref<256x128xbf16, #tpu.memory_space<vmem>>, vector<256x128xbf16>
    %cst_8 = arith.constant dense<0.000000e+00> : vector<256x128xf32>
    %11 = tpu.matmul %9, %10, %cst_8 {dimension_numbers = #tpu.dot_dimension_numbers<[1], [0], [0], [1], [0, 0, 1, 1], [], []>} : vector<256x256xbf16>, vector<256x128xbf16>, vector<256x128xf32> -> vector<256x128xf32>
    %c0_9 = arith.constant 0 : index
    %c0_10 = arith.constant 0 : index
    %12 = vector.load %arg5[%c0_9, %c0_10] : memref<1x128xf32, #tpu.memory_space<vmem>>, vector<1x128xf32>
    %13 = vector.broadcast %12 : vector<1x128xf32> to vector<256x128xf32>
    %14 = arith.addf %11, %13 : vector<256x128xf32>
    %cst_11 = arith.constant 0.000000e+00 : f32
    %15 = vector.broadcast %cst_11 : f32 to vector<256x128xf32>
    %16 = arith.maximumf %14, %15 : vector<256x128xf32>
    %c0_12 = arith.constant 0 : index
    %c0_13 = arith.constant 0 : index
    %17 = vector.load %arg6[%c0_12, %c0_13] : memref<1x128xf32, #tpu.memory_space<vmem>>, vector<1x128xf32>
    %18 = vector.broadcast %17 : vector<1x128xf32> to vector<256x128xf32>
    %19 = arith.mulf %16, %18 : vector<256x128xf32>
    %cst_14 = arith.constant dense<0.000000e+00> : vector<256xf32>
    %20 = vector.multi_reduction <add>, %19, %cst_14 [1] : vector<256x128xf32> to vector<256xf32>
    %21 = vector.shape_cast %20 : vector<256xf32> to vector<256x1xf32>
    %c0_15 = arith.constant 0 : index
    %22 = memref.load %arg7[%c0_15] : memref<1xf32, #tpu.memory_space<smem>>
    %23 = vector.broadcast %22 : f32 to vector<256x1xf32>
    %24 = arith.addf %21, %23 : vector<256x1xf32>
    %25 = arith.negf %24 : vector<256x1xf32>
    %26 = math.exp %25 : vector<256x1xf32>
    %cst_16 = arith.constant 1.000000e+00 : f32
    %27 = vector.broadcast %cst_16 : f32 to vector<256x1xf32>
    %28 = arith.addf %27, %26 : vector<256x1xf32>
    %29 = arith.divf %27, %28 : vector<256x1xf32>
    %c0_17 = arith.constant 0 : index
    %c0_18 = arith.constant 0 : index
    %30 = vector.load %arg8[%c0_17, %c0_18] : memref<256x1xf32, #tpu.memory_space<vmem>>, vector<256x1xf32>
    tpu.vector_store %arg8[%c0_17, %c0_18], %29 {strides = array<i32>} : memref<256x1xf32, #tpu.memory_space<vmem>>, vector<256x1xf32>,
    return
  }
  func.func @transform_0(%arg0: i32) -> (i32, i32) {
    %c0_i32 = arith.constant 0 : i32
    %c0_i32_0 = arith.constant 0 : i32
    return %arg0, %c0_i32 : i32, i32
  }
  func.func @transform_1(%arg0: i32) -> (i32, i32) {
    %c0_i32 = arith.constant 0 : i32
    %c0_i32_0 = arith.constant 0 : i32
    %c0_i32_1 = arith.constant 0 : i32
    return %c0_i32, %c0_i32_0 : i32, i32
  }
  func.func @transform_2(%arg0: i32) -> (i32, i32) {
    %c0_i32 = arith.constant 0 : i32
    %c0_i32_0 = arith.constant 0 : i32
    %c0_i32_1 = arith.constant 0 : i32
    return %c0_i32, %c0_i32_0 : i32, i32
  }
  func.func @transform_3(%arg0: i32) -> (i32, i32) {
    %c0_i32 = arith.constant 0 : i32
    %c0_i32_0 = arith.constant 0 : i32
    %c0_i32_1 = arith.constant 0 : i32
    return %c0_i32, %c0_i32_0 : i32, i32
  }
  func.func @transform_4(%arg0: i32) -> (i32, i32) {
    %c0_i32 = arith.constant 0 : i32
    %c0_i32_0 = arith.constant 0 : i32
    %c0_i32_1 = arith.constant 0 : i32
    return %c0_i32, %c0_i32_0 : i32, i32
  }
  func.func @transform_5(%arg0: i32) -> (i32, i32) {
    %c0_i32 = arith.constant 0 : i32
    %c0_i32_0 = arith.constant 0 : i32
    %c0_i32_1 = arith.constant 0 : i32
    return %c0_i32, %c0_i32_0 : i32, i32
  }
  func.func @transform_6(%arg0: i32) -> i32 {
    %c0_i32 = arith.constant 0 : i32
    %c0_i32_0 = arith.constant 0 : i32
    return %c0_i32 : i32
  }
  func.func @transform_7(%arg0: i32) -> (i32, i32) {
    %c0_i32 = arith.constant 0 : i32
    %c0_i32_0 = arith.constant 0 : i32
    return %arg0, %c0_i32 : i32, i32
  }
}

</mosaic_0001>

<llo_original>
// kernel: tpu_custom_call.1
$region0: #{tpu_custom_call.1}
  #allocation0 [shape = 'u32[]', space=smem, size = 0x4, offset = 0x4, fixed_abs, tag = 'smem constant byte address 0x4 - core index']
  #allocation1 [shape = 'u32[72,128]{1,0:T(1,128)}', space=vmem, size = 0x9000, scoped, tag = 'internal scratch']
  #allocation2 [shape = 'f32[1]{0:T(128)S(6)}', space=smem, size = 0x200, scoped, tag = 'scoped memory for tpu_custom_call.1']
  %s0 = inlined_call_operand.hbm [shape: f32[512,512], index: 0, kind: input, shape index: {}]
  %s1 = inlined_call_operand.hbm [shape: bf16[512,256], index: 1, kind: input, shape index: {}]
  %s2 = inlined_call_operand.vmem [shape: f32[1,256], index: 2, kind: input, shape index: {}]
  %s3 = inlined_call_operand.hbm [shape: bf16[256,128], index: 3, kind: input, shape index: {}]
  %s4 = inlined_call_operand.vmem [shape: f32[1,128], index: 4, kind: input, shape index: {}]
  %s5 = inlined_call_operand.vmem [shape: f32[1,128], index: 5, kind: input, shape index: {}]
  %s6 = inlined_call_operand.<no memory space> [shape: f32[1], index: 6, kind: input, shape index: {}]
  %s7 = inlined_call_operand.vmem [shape: f32[512,1], index: 7, kind: output, shape index: {}]
  %s8 = sld [smem:[#allocation0]]
  $region73: #{tpu_custom_call.1} parent=0
    _
  %s10 = ssub.s32 1, %s8
  %s11 = scalar_select 0, %s10, %s8
  %12 = sst [smem:[#allocation2]] %s6
  $region1: #{tpu_custom_call.1} parent=0
    #allocation3 [shape = 'u8[1048576]{0}', space=vmem, size = 0x100000, scoped, tag = 'input window, operand 0']
    #allocation4 [shape = 's32[2]{0}', space=sflag, size = 0x8, scoped, tag = 'scoped memory for tpu_custom_call.1']
    #allocation5 [shape = 'u8[262144]{0}', space=vmem, size = 0x40000, scoped, tag = 'input window, operand 1, single buffered']
    #allocation6 [shape = 's32[1]{0}', space=sflag, size = 0x4, scoped, tag = 'scoped memory for tpu_custom_call.1']
    #allocation7 [shape = 'u8[65536]{0}', space=vmem, size = 0x10000, scoped, tag = 'input window, operand 3, single buffered']
    %13 = vsyncpa [#allocation4], 0
    %s14 = scalar_lea.sflag [#allocation4], 1
    %15 = vsyncpa %s14, 0
    %16 = vsyncpa [#allocation6], 0
    loop: start=0, step=1, limit=4
    $region2: #{tpu_custom_call.1} parent=1 // loop_pre_header
      _
    $region3: #{tpu_custom_call.1} parent=1 // loop_header
      %s18 = sphi 0, %s22
      %p19 = scmp.ge.s32.totalorder %s18, 4
      %s28 = sphi 0, %s30
      %s31 = sphi 0, %s28
      %s32 = sphi 0, %s31
      %s48 = sphi 0, %s32
      %s52 = sphi 0, %s52
      %s54 = sphi 0, %s52
      %s55 = sphi 0, %s54
      %s69 = sphi 0, %s55
      %s73 = sphi 0, %s73
      %s75 = sphi 0, %s73
      %s76 = sphi 0, %s75
      %s90 = sphi 0, %s76
      %s94 = sphi 0, %s94
      %s96 = sphi 0, %s94
      %s97 = sphi 0, %s96
      %s111 = sphi 0, %s97
      %s115 = sphi 0, %s115
      %s117 = sphi 0, %s115
      %s118 = sphi 0, %s117
      %s132 = sphi 0, %s118
      %s136 = sphi 0, %s136
      %s138 = sphi 0, %s136
      %s139 = sphi 0, %s138
      %s153 = sphi 0, %s139
      %s157 = sphi 0, %s157
      %s159 = sphi 0, %s157
      %s160 = sphi 0, %s159
      %s174 = sphi 0, %s160
      %s180 = sphi 0, %s182
      %s183 = sphi 0, %s180
      %s184 = sphi 0, %s183
      %s200 = sphi 0, %s184
    $region4: #{tpu_custom_call.1} parent=1 // loop_header_branch
      %21 = sbr.rel (%p19) target = $region8
    $region5: #{tpu_custom_call.1} parent=1 // loop_body
      %s23 = ssub.s32 %s18, 1
      %s24 = ssub.s32 %s18, 2
      %s25 = sadd.s32 %s18, 1
      %s26 = ssub.s32 %s18, %s25
      %p27 = scmp.eq.s32.totalorder %s26, 0
      %s29 = sadd.s32 %s28, 1
      %s30 = scalar_select %p27, %s28, %s29
      %p33 = pneg %p27
      %p34 = scmp.eq.s32.totalorder %s18, 1
      %p35 = por %p33, %p34
      %p36 = scmp.ne.s32.totalorder %s28, %s31
      %p37 = scmp.eq.s32.totalorder %s18, 0
      %p38 = por %p36, %p37
      %p39 = scmp.ne.s32.totalorder %s28, %s31
      %p40 = scmp.eq.s32.totalorder %s23, 1
      %p41 = por %p39, %p40
      %p42 = scmp.ne.s32.totalorder %s31, %s32
      %p43 = scmp.eq.s32.totalorder %s23, 0
      %p44 = por %p42, %p43
      %p45 = scmp.ne.s32.totalorder %s31, %s32
      %p46 = scmp.eq.s32.totalorder %s24, 1
      %p47 = por %p45, %p46
      %p49 = scmp.ne.s32.totalorder %s32, %s48
      %p50 = scmp.eq.s32.totalorder %s24, 0
      %p51 = por %p49, %p50
      %s53 = sadd.s32 %s52, 1
      %p56 = scmp.eq.s32.totalorder %s18, 1
      %p57 = scmp.ne.s32.totalorder %s52, %s54
      %p58 = scmp.eq.s32.totalorder %s18, 0
      %p59 = por %p57, %p58
      %p60 = scmp.ne.s32.totalorder %s52, %s54
      %p61 = scmp.eq.s32.totalorder %s23, 1
      %p62 = por %p60, %p61
      %p63 = scmp.ne.s32.totalorder %s54, %s55
      %p64 = scmp.eq.s32.totalorder %s23, 0
      %p65 = por %p63, %p64
      %p66 = scmp.ne.s32.totalorder %s54, %s55
      %p67 = scmp.eq.s32.totalorder %s24, 1
      %p68 = por %p66, %p67
      %p70 = scmp.ne.s32.totalorder %s55, %s69
      %p71 = scmp.eq.s32.totalorder %s24, 0
      %p72 = por %p70, %p71
      %s74 = sadd.s32 %s73, 1
      %p77 = scmp.eq.s32.totalorder %s18, 1
      %p78 = scmp.ne.s32.totalorder %s73, %s75
      %p79 = scmp.eq.s32.totalorder %s18, 0
      %p80 = por %p78, %p79
      %p81 = scmp.ne.s32.totalorder %s73, %s75
      %p82 = scmp.eq.s32.totalorder %s23, 1
      %p83 = por %p81, %p82
      %p84 = scmp.ne.s32.totalorder %s75, %s76
      %p85 = scmp.eq.s32.totalorder %s23, 0
      %p86 = por %p84, %p85
      %p87 = scmp.ne.s32.totalorder %s75, %s76
      %p88 = scmp.eq.s32.totalorder %s24, 1
      %p89 = por %p87, %p88
      %p91 = scmp.ne.s32.totalorder %s76, %s90
      %p92 = scmp.eq.s32.totalorder %s24, 0
      %p93 = por %p91, %p92
      %s95 = sadd.s32 %s94, 1
      %p98 = scmp.eq.s32.totalorder %s18, 1
      %p99 = scmp.ne.s32.totalorder %s94, %s96
      %p100 = scmp.eq.s32.totalorder %s18, 0
      %p101 = por %p99, %p100
      %p102 = scmp.ne.s32.totalorder %s94, %s96
      %p103 = scmp.eq.s32.totalorder %s23, 1
      %p104 = por %p102, %p103
      %p105 = scmp.ne.s32.totalorder %s96, %s97
      %p106 = scmp.eq.s32.totalorder %s23, 0
      %p107 = por %p105, %p106
      %p108 = scmp.ne.s32.totalorder %s96, %s97
      %p109 = scmp.eq.s32.totalorder %s24, 1
      %p110 = por %p108, %p109
      %p112 = scmp.ne.s32.totalorder %s97, %s111
      %p113 = scmp.eq.s32.totalorder %s24, 0
      %p114 = por %p112, %p113
      %s116 = sadd.s32 %s115, 1
      %p119 = scmp.eq.s32.totalorder %s18, 1
      %p120 = scmp.ne.s32.totalorder %s115, %s117
      %p121 = scmp.eq.s32.totalorder %s18, 0
      %p122 = por %p120, %p121
      %p123 = scmp.ne.s32.totalorder %s115, %s117
      %p124 = scmp.eq.s32.totalorder %s23, 1
      %p125 = por %p123, %p124
      %p126 = scmp.ne.s32.totalorder %s117, %s118
      %p127 = scmp.eq.s32.totalorder %s23, 0
      %p128 = por %p126, %p127
      %p129 = scmp.ne.s32.totalorder %s117, %s118
      %p130 = scmp.eq.s32.totalorder %s24, 1
      %p131 = por %p129, %p130
      %p133 = scmp.ne.s32.totalorder %s118, %s132
      %p134 = scmp.eq.s32.totalorder %s24, 0
      %p135 = por %p133, %p134
      %s137 = sadd.s32 %s136, 1
      %p140 = scmp.eq.s32.totalorder %s18, 1
      %p141 = scmp.ne.s32.totalorder %s136, %s138
      %p142 = scmp.eq.s32.totalorder %s18, 0
      %p143 = por %p141, %p142
      %p144 = scmp.ne.s32.totalorder %s136, %s138
      %p145 = scmp.eq.s32.totalorder %s23, 1
      %p146 = por %p144, %p145
      %p147 = scmp.ne.s32.totalorder %s138, %s139
      %p148 = scmp.eq.s32.totalorder %s23, 0
      %p149 = por %p147, %p148
      %p150 = scmp.ne.s32.totalorder %s138, %s139
      %p151 = scmp.eq.s32.totalorder %s24, 1
      %p152 = por %p150, %p151
      %p154 = scmp.ne.s32.totalorder %s139, %s153
      %p155 = scmp.eq.s32.totalorder %s24, 0
      %p156 = por %p154, %p155
      %s158 = sadd.s32 %s157, 1
      %p161 = scmp.eq.s32.totalorder %s18, 1
      %p162 = scmp.ne.s32.totalorder %s157, %s159
      %p163 = scmp.eq.s32.totalorder %s18, 0
      %p164 = por %p162, %p163
      %p165 = scmp.ne.s32.totalorder %s157, %s159
      %p166 = scmp.eq.s32.totalorder %s23, 1
      %p167 = por %p165, %p166
      %p168 = scmp.ne.s32.totalorder %s159, %s160
      %p169 = scmp.eq.s32.totalorder %s23, 0
      %p170 = por %p168, %p169
      %p171 = scmp.ne.s32.totalorder %s159, %s160
      %p172 = scmp.eq.s32.totalorder %s24, 1
      %p173 = por %p171, %p172
      %p175 = scmp.ne.s32.totalorder %s160, %s174
      %p176 = scmp.eq.s32.totalorder %s24, 0
      %p177 = por %p175, %p176
      %s178 = ssub.s32 %s18, %s25
      %p179 = scmp.eq.s32.totalorder %s178, 0
      %s181 = sadd.s32 %s180, 1
      %s182 = scalar_select %p179, %s180, %s181
      %p185 = pneg %p179
      %p186 = scmp.eq.s32.totalorder %s18, 1
      %p187 = por %p185, %p186
      %p188 = scmp.ne.s32.totalorder %s180, %s183
      %p189 = scmp.eq.s32.totalorder %s18, 0
      %p190 = por %p188, %p189
      %p191 = scmp.ne.s32.totalorder %s180, %s183
      %p192 = scmp.eq.s32.totalorder %s23, 1
      %p193 = por %p191, %p192
      %p194 = scmp.ne.s32.totalorder %s183, %s184
      %p195 = scmp.eq.s32.totalorder %s23, 0
      %p196 = por %p194, %p195
      %p197 = scmp.ne.s32.totalorder %s183, %s184
      %p198 = scmp.eq.s32.totalorder %s24, 1
      %p199 = por %p197, %p198
      %p201 = scmp.ne.s32.totalorder %s184, %s200
      %p202 = scmp.eq.s32.totalorder %s24, 0
      %p203 = por %p201, %p202
      %p204 = scmp.le.s32.totalorder 1, %s18
      %p205 = scmp.lt.s32.totalorder %s18, 3
      %p206 = pnand %p204, %p205
      %p207 = pneg %p206
      // Predicated region
      $region9: #{tpu_custom_call.1} parent=5 // pred_check
        _
      $region10: #{tpu_custom_call.1} parent=5 // pred_check_branch
        %209 = sbr.rel (%p206) target = $region12
      $region11: #{tpu_custom_call.1} parent=5 // pred_region
        %s210 = ssub.s32 %s18, 1
        // Predicated region
        $region13: #{tpu_custom_call.1} parent=11 // pred_check
          %p211 = pneg %p65
        $region14: #{tpu_custom_call.1} parent=11 // pred_check_branch
          %213 = sbr.rel (%p211) target = $region16
        $region15: #{tpu_custom_call.1} parent=11 // pred_region
          %215 = vsyncadd [#allocation6], 0
          %s216 = sshll.u32 %s1, 4
          %s217 = int_to_ptr.hbm [resolvable:$true] %s216
          %s218 = sshll.u32 [#allocation5], 4
          %s219 = int_to_ptr.vmem [resolvable:$true] %s218
          %224 = dma.hbm_to_vmem [thread:$0]  %s217, 8192, %s219, [#allocation6], 128, 128, 8
        $region16: #{tpu_custom_call.1} parent=11 // pred_fallthru
          _
        // Predicated region
        $region17: #{tpu_custom_call.1} parent=11 // pred_check
          %p225 = pneg %p86
        $region18: #{tpu_custom_call.1} parent=11 // pred_check_branch
          %227 = sbr.rel (%p225) target = $region20
        $region19: #{tpu_custom_call.1} parent=11 // pred_region
          _
        $region20: #{tpu_custom_call.1} parent=11 // pred_fallthru
          _
        // Predicated region
        $region21: #{tpu_custom_call.1} parent=11 // pred_check
          %p228 = pneg %p107
        $region22: #{tpu_custom_call.1} parent=11 // pred_check_branch
          %230 = sbr.rel (%p228) target = $region24
        $region23: #{tpu_custom_call.1} parent=11 // pred_region
          %232 = vsyncadd [#allocation6], 0
          %s233 = sshll.u32 %s3, 4
          %s234 = int_to_ptr.hbm [resolvable:$true] %s233
          %s235 = sshll.u32 [#allocation7], 4
          %s236 = int_to_ptr.vmem [resolvable:$true] %s235
          %241 = dma.hbm_to_vmem [thread:$0]  %s234, 2048, %s236, [#allocation6], 64, 64, 4
        $region24: #{tpu_custom_call.1} parent=11 // pred_fallthru
          _
        // Predicated region
        $region25: #{tpu_custom_call.1} parent=11 // pred_check
          %p242 = pneg %p128
        $region26: #{tpu_custom_call.1} parent=11 // pred_check_branch
          %244 = sbr.rel (%p242) target = $region28
        $region27: #{tpu_custom_call.1} parent=11 // pred_region
          _
        $region28: #{tpu_custom_call.1} parent=11 // pred_fallthru
          _
        // Predicated region
        $region29: #{tpu_custom_call.1} parent=11 // pred_check
          %p245 = pneg %p149
        $region30: #{tpu_custom_call.1} parent=11 // pred_check_branch
          %247 = sbr.rel (%p245) target = $region32
        $region31: #{tpu_custom_call.1} parent=11 // pred_region
          _
        $region32: #{tpu_custom_call.1} parent=11 // pred_fallthru
          _
        // Predicated region
        $region33: #{tpu_custom_call.1} parent=11 // pred_check
          %p248 = pneg %p170
        $region34: #{tpu_custom_call.1} parent=11 // pred_check_branch
          %250 = sbr.rel (%p248) target = $region36
        $region35: #{tpu_custom_call.1} parent=11 // pred_region
          _
        $region36: #{tpu_custom_call.1} parent=11 // pred_fallthru
          _
      $region12: #{tpu_custom_call.1} parent=5 // pred_fallthru
        _
      %p251 = scmp.lt.s32.totalorder %s18, 2
      // Predicated region
      $region37: #{tpu_custom_call.1} parent=5 // pred_check
        %p252 = pneg %p251
      $region38: #{tpu_custom_call.1} parent=5 // pred_check_branch
        %254 = sbr.rel (%p252) target = $region40
      $region39: #{tpu_custom_call.1} parent=5 // pred_region
        // Predicated region
        $region41: #{tpu_custom_call.1} parent=39 // pred_check
          %p255 = pneg %p38
        $region42: #{tpu_custom_call.1} parent=39 // pred_check_branch
          %257 = sbr.rel (%p255) target = $region44
        $region43: #{tpu_custom_call.1} parent=39 // pred_region
          %s258 = sand.u32 %s28, 1
          %s259 = scalar_lea.sflag [#allocation4], %s258
          %s260 = sand.u32 %s28, 1
          %s261 = smul.addr %s260, 1024
          %s262 = scalar_lea.vmem [#allocation3], %s261
          %s263 = smul.u32 32, %s18
          %265 = vsyncadd %s259, 0
          %s266 = smul.addr %s263, 4
          %s267 = smul.addr %s266, 8
          %s268 = scalar_lea.hbm %s0, %s267
          %s269 = sshll.u32 %s268, 4
          %s270 = int_to_ptr.hbm [resolvable:$true] %s269
          %s271 = sshll.u32 %s262, 4
          %s272 = int_to_ptr.vmem [resolvable:$true] %s271
          %277 = dma.hbm_to_vmem [thread:$0]  %s270, 16384, %s272, %s259, 512, 512, 32
        $region44: #{tpu_custom_call.1} parent=39 // pred_fallthru
          _
      $region40: #{tpu_custom_call.1} parent=5 // pred_fallthru
        _
      %p278 = scmp.le.s32.totalorder 1, %s18
      %p279 = scmp.lt.s32.totalorder %s18, 3
      %p280 = pnand %p278, %p279
      %p281 = pneg %p280
      // Predicated region
      $region45: #{tpu_custom_call.1} parent=5 // pred_check
        _
      $region46: #{tpu_custom_call.1} parent=5 // pred_check_branch
        %283 = sbr.rel (%p280) target = $region48
      $region47: #{tpu_custom_call.1} parent=5 // pred_region
        %s284 = ssub.s32 %s18, 1
        %s285 = sand.u32 %s31, 1
        %s286 = scalar_lea.sflag [#allocation4], %s285
        %s287 = sand.u32 %s31, 1
        %s288 = smul.addr %s287, 1024
        %s289 = scalar_lea.vmem [#allocation3], %s288
        // Predicated region
        $region49: #{tpu_custom_call.1} parent=47 // pred_check
          %p290 = pneg %p44
        $region50: #{tpu_custom_call.1} parent=47 // pred_check_branch
          %292 = sbr.rel (%p290) target = $region52
        $region51: #{tpu_custom_call.1} parent=47 // pred_region
          %294 = dma.done %s286, 16384
        $region52: #{tpu_custom_call.1} parent=47 // pred_fallthru
          _
        // Predicated region
        $region53: #{tpu_custom_call.1} parent=47 // pred_check
          %p295 = pneg %p65
        $region54: #{tpu_custom_call.1} parent=47 // pred_check_branch
          %297 = sbr.rel (%p295) target = $region56
        $region55: #{tpu_custom_call.1} parent=47 // pred_region
          %299 = dma.done [#allocation6], 8192
        $region56: #{tpu_custom_call.1} parent=47 // pred_fallthru
          _
        // Predicated region
        $region57: #{tpu_custom_call.1} parent=47 // pred_check
          %p300 = pneg %p107
        $region58: #{tpu_custom_call.1} parent=47 // pred_check_branch
          %302 = sbr.rel (%p300) target = $region60
        $region59: #{tpu_custom_call.1} parent=47 // pred_region
          %304 = dma.done [#allocation6], 2048
        $region60: #{tpu_custom_call.1} parent=47 // pred_fallthru
          _
        %s305 = sand.u32 %s31, 1
        %s306 = scalar_lea.sflag [#allocation4], %s305
        %s307 = sand.u32 %s31, 1
        %s308 = smul.addr %s307, 1024
        %s309 = scalar_lea.vmem [#allocation3], %s308
        %p310 = pneg %p44
        %p311 = pneg %p41
        %p312 = pneg %p65
        %p313 = pneg %p62
        %p314 = pneg %p86
        %p315 = pneg %p83
        %p316 = pneg %p107
        %p317 = pneg %p104
        %p318 = pneg %p128
        %p319 = pneg %p125
        %p320 = pneg %p149
        %p321 = pneg %p146
        %p322 = pneg %p170
        %p323 = pneg %p167
        %p324 = pneg %p196
        %p325 = pneg %p193
        %s326 = smul.u32 32, %s23
        %p327 = scmp.lt.s32.totalorder %s326, 63
        %s328 = scalar_select %p327, %s326, 63
        %s329 = smul.addr %s328, 8
        %s330 = scalar_lea.vmem %s7, %s329
        %s331 = smul.u32 32, %s23
        %s332 = smul.u32 32, %s23
        %p333 = scmp.lt.s32.totalorder %s332, 63
        %s334 = scalar_select %p333, %s332, 63
        %s335 = smul.addr %s334, 8
        %s336 = scalar_lea.vmem %s7, %s335
        %s337 = smul.u32 32, %s23
        %v338 = vld [vmem:[%s289] sm:$0xff]
        %v339 = vld [vmem:[%s289 + $0x8] sm:$0xff]
        %v340 = vld [vmem:[%s289 + $0x10] sm:$0xff]
        %v341 = vld [vmem:[%s289 + $0x18] sm:$0xff]
        %v342 = vld [vmem:[%s289 + $0x20] sm:$0xff]
        %v343 = vld [vmem:[%s289 + $0x28] sm:$0xff]
        %v344 = vld [vmem:[%s289 + $0x30] sm:$0xff]
        %v345 = vld [vmem:[%s289 + $0x38] sm:$0xff]
        %v346 = vld [vmem:[%s289 + $0x40] sm:$0xff]
        %v347 = vld [vmem:[%s289 + $0x48] sm:$0xff]
        %v348 = vld [vmem:[%s289 + $0x50] sm:$0xff]
        %v349 = vld [vmem:[%s289 + $0x58] sm:$0xff]
        %v350 = vld [vmem:[%s289 + $0x60] sm:$0xff]
        %v351 = vld [vmem:[%s289 + $0x68] sm:$0xff]
        %v352 = vld [vmem:[%s289 + $0x70] sm:$0xff]
        %v353 = vld [vmem:[%s289 + $0x78] sm:$0xff]
        %v354 = vld [vmem:[%s289 + $0x80] sm:$0xff]
        %v355 = vld [vmem:[%s289 + $0x88] sm:$0xff]
        %v356 = vld [vmem:[%s289 + $0x90] sm:$0xff]
        %v357 = vld [vmem:[%s289 + $0x98] sm:$0xff]
        %v358 = vld [vmem:[%s289 + $0xa0] sm:$0xff]
        %v359 = vld [vmem:[%s289 + $0xa8] sm:$0xff]
        %v360 = vld [vmem:[%s289 + $0xb0] sm:$0xff]
        %v361 = vld [vmem:[%s289 + $0xb8] sm:$0xff]
        %v362 = vld [vmem:[%s289 + $0xc0] sm:$0xff]
        %v363 = vld [vmem:[%s289 + $0xc8] sm:$0xff]
        %v364 = vld [vmem:[%s289 + $0xd0] sm:$0xff]
        %v365 = vld [vmem:[%s289 + $0xd8] sm:$0xff]
        %v366 = vld [vmem:[%s289 + $0xe0] sm:$0xff]
        %v367 = vld [vmem:[%s289 + $0xe8] sm:$0xff]
        %v368 = vld [vmem:[%s289 + $0xf0] sm:$0xff]
        %v369 = vld [vmem:[%s289 + $0xf8] sm:$0xff]
        %v370 = vld [vmem:[%s289 + $0x100] sm:$0xff]
        %v371 = vld [vmem:[%s289 + $0x108] sm:$0xff]
        %v372 = vld [vmem:[%s289 + $0x110] sm:$0xff]
        %v373 = vld [vmem:[%s289 + $0x118] sm:$0xff]
        %v374 = vld [vmem:[%s289 + $0x120] sm:$0xff]
        %v375 = vld [vmem:[%s289 + $0x128] sm:$0xff]
        %v376 = vld [vmem:[%s289 + $0x130] sm:$0xff]
        %v377 = vld [vmem:[%s289 + $0x138] sm:$0xff]
        %v378 = vld [vmem:[%s289 + $0x140] sm:$0xff]
        %v379 = vld [vmem:[%s289 + $0x148] sm:$0xff]
        %v380 = vld [vmem:[%s289 + $0x150] sm:$0xff]
        %v381 = vld [vmem:[%s289 + $0x158] sm:$0xff]
        %v382 = vld [vmem:[%s289 + $0x160] sm:$0xff]
        %v383 = vld [vmem:[%s289 + $0x168] sm:$0xff]
        %v384 = vld [vmem:[%s289 + $0x170] sm:$0xff]
        %v385 = vld [vmem:[%s289 + $0x178] sm:$0xff]
        %v386 = vld [vmem:[%s289 + $0x180] sm:$0xff]
        %v387 = vld [vmem:[%s289 + $0x188] sm:$0xff]
        %v388 = vld [vmem:[%s289 + $0x190] sm:$0xff]
        %v389 = vld [vmem:[%s289 + $0x198] sm:$0xff]
        %v390 = vld [vmem:[%s289 + $0x1a0] sm:$0xff]
        %v391 = vld [vmem:[%s289 + $0x1a8] sm:$0xff]
        %v392 = vld [vmem:[%s289 + $0x1b0] sm:$0xff]
        %v393 = vld [vmem:[%s289 + $0x1b8] sm:$0xff]
        %v394 = vld [vmem:[%s289 + $0x1c0] sm:$0xff]
        %v395 = vld [vmem:[%s289 + $0x1c8] sm:$0xff]
        %v396 = vld [vmem:[%s289 + $0x1d0] sm:$0xff]
        %v397 = vld [vmem:[%s289 + $0x1d8] sm:$0xff]
        %v398 = vld [vmem:[%s289 + $0x1e0] sm:$0xff]
        %v399 = vld [vmem:[%s289 + $0x1e8] sm:$0xff]
        %v400 = vld [vmem:[%s289 + $0x1f0] sm:$0xff]
        %v401 = vld [vmem:[%s289 + $0x1f8] sm:$0xff]
        %v402 = vld [vmem:[%s289 + $0x200] sm:$0xff]
        %v403 = vld [vmem:[%s289 + $0x208] sm:$0xff]
        %v404 = vld [vmem:[%s289 + $0x210] sm:$0xff]
        %v405 = vld [vmem:[%s289 + $0x218] sm:$0xff]
        %v406 = vld [vmem:[%s289 + $0x220] sm:$0xff]
        %v407 = vld [vmem:[%s289 + $0x228] sm:$0xff]
        %v408 = vld [vmem:[%s289 + $0x230] sm:$0xff]
        %v409 = vld [vmem:[%s289 + $0x238] sm:$0xff]
        %v410 = vld [vmem:[%s289 + $0x240] sm:$0xff]
        %v411 = vld [vmem:[%s289 + $0x248] sm:$0xff]
        %v412 = vld [vmem:[%s289 + $0x250] sm:$0xff]
        %v413 = vld [vmem:[%s289 + $0x258] sm:$0xff]
        %v414 = vld [vmem:[%s289 + $0x260] sm:$0xff]
        %v415 = vld [vmem:[%s289 + $0x268] sm:$0xff]
        %v416 = vld [vmem:[%s289 + $0x270] sm:$0xff]
        %v417 = vld [vmem:[%s289 + $0x278] sm:$0xff]
        %v418 = vld [vmem:[%s289 + $0x280] sm:$0xff]
        %v419 = vld [vmem:[%s289 + $0x288] sm:$0xff]
        %v420 = vld [vmem:[%s289 + $0x290] sm:$0xff]
        %v421 = vld [vmem:[%s289 + $0x298] sm:$0xff]
        %v422 = vld [vmem:[%s289 + $0x2a0] sm:$0xff]
        %v423 = vld [vmem:[%s289 + $0x2a8] sm:$0xff]
        %v424 = vld [vmem:[%s289 + $0x2b0] sm:$0xff]
        %v425 = vld [vmem:[%s289 + $0x2b8] sm:$0xff]
        %v426 = vld [vmem:[%s289 + $0x2c0] sm:$0xff]
        %v427 = vld [vmem:[%s289 + $0x2c8] sm:$0xff]
        %v428 = vld [vmem:[%s289 + $0x2d0] sm:$0xff]
        %v429 = vld [vmem:[%s289 + $0x2d8] sm:$0xff]
        %v430 = vld [vmem:[%s289 + $0x2e0] sm:$0xff]
        %v431 = vld [vmem:[%s289 + $0x2e8] sm:$0xff]
        %v432 = vld [vmem:[%s289 + $0x2f0] sm:$0xff]
        %v433 = vld [vmem:[%s289 + $0x2f8] sm:$0xff]
        %v434 = vld [vmem:[%s289 + $0x300] sm:$0xff]
        %v435 = vld [vmem:[%s289 + $0x308] sm:$0xff]
        %v436 = vld [vmem:[%s289 + $0x310] sm:$0xff]
        %v437 = vld [vmem:[%s289 + $0x318] sm:$0xff]
        %v438 = vld [vmem:[%s289 + $0x320] sm:$0xff]
        %v439 = vld [vmem:[%s289 + $0x328] sm:$0xff]
        %v440 = vld [vmem:[%s289 + $0x330] sm:$0xff]
        %v441 = vld [vmem:[%s289 + $0x338] sm:$0xff]
        %v442 = vld [vmem:[%s289 + $0x340] sm:$0xff]
        %v443 = vld [vmem:[%s289 + $0x348] sm:$0xff]
        %v444 = vld [vmem:[%s289 + $0x350] sm:$0xff]
        %v445 = vld [vmem:[%s289 + $0x358] sm:$0xff]
        %v446 = vld [vmem:[%s289 + $0x360] sm:$0xff]
        %v447 = vld [vmem:[%s289 + $0x368] sm:$0xff]
        %v448 = vld [vmem:[%s289 + $0x370] sm:$0xff]
        %v449 = vld [vmem:[%s289 + $0x378] sm:$0xff]
        %v450 = vld [vmem:[%s289 + $0x380] sm:$0xff]
        %v451 = vld [vmem:[%s289 + $0x388] sm:$0xff]
        %v452 = vld [vmem:[%s289 + $0x390] sm:$0xff]
        %v453 = vld [vmem:[%s289 + $0x398] sm:$0xff]
        %v454 = vld [vmem:[%s289 + $0x3a0] sm:$0xff]
        %v455 = vld [vmem:[%s289 + $0x3a8] sm:$0xff]
        %v456 = vld [vmem:[%s289 + $0x3b0] sm:$0xff]
        %v457 = vld [vmem:[%s289 + $0x3b8] sm:$0xff]
        %v458 = vld [vmem:[%s289 + $0x3c0] sm:$0xff]
        %v459 = vld [vmem:[%s289 + $0x3c8] sm:$0xff]
        %v460 = vld [vmem:[%s289 + $0x3d0] sm:$0xff]
        %v461 = vld [vmem:[%s289 + $0x3d8] sm:$0xff]
        %v462 = vld [vmem:[%s289 + $0x3e0] sm:$0xff]
        %v463 = vld [vmem:[%s289 + $0x3e8] sm:$0xff]
        %v464 = vld [vmem:[%s289 + $0x3f0] sm:$0xff]
        %v465 = vld [vmem:[%s289 + $0x3f8] sm:$0xff]
        %v466 = vpack.c.bf16 %v342, %v338
        %v467 = vpack.c.bf16 %v343, %v339
        %v468 = vpack.c.bf16 %v344, %v340
        %v469 = vpack.c.bf16 %v345, %v341
        %v470 = vpack.c.bf16 %v350, %v346
        %v471 = vpack.c.bf16 %v351, %v347
        %v472 = vpack.c.bf16 %v352, %v348
        %v473 = vpack.c.bf16 %v353, %v349
        %v474 = vpack.c.bf16 %v358, %v354
        %v475 = vpack.c.bf16 %v359, %v355
        %v476 = vpack.c.bf16 %v360, %v356
        %v477 = vpack.c.bf16 %v361, %v357
        %v478 = vpack.c.bf16 %v366, %v362
        %v479 = vpack.c.bf16 %v367, %v363
        %v480 = vpack.c.bf16 %v368, %v364
        %v481 = vpack.c.bf16 %v369, %v365
        %v482 = vpack.c.bf16 %v374, %v370
        %v483 = vpack.c.bf16 %v375, %v371
        %v484 = vpack.c.bf16 %v376, %v372
        %v485 = vpack.c.bf16 %v377, %v373
        %v486 = vpack.c.bf16 %v382, %v378
        %v487 = vpack.c.bf16 %v383, %v379
        %v488 = vpack.c.bf16 %v384, %v380
        %v489 = vpack.c.bf16 %v385, %v381
        %v490 = vpack.c.bf16 %v390, %v386
        %v491 = vpack.c.bf16 %v391, %v387
        %v492 = vpack.c.bf16 %v392, %v388
        %v493 = vpack.c.bf16 %v393, %v389
        %v494 = vpack.c.bf16 %v398, %v394
        %v495 = vpack.c.bf16 %v399, %v395
        %v496 = vpack.c.bf16 %v400, %v396
        %v497 = vpack.c.bf16 %v401, %v397
        %v498 = vpack.c.bf16 %v406, %v402
        %v499 = vpack.c.bf16 %v407, %v403
        %v500 = vpack.c.bf16 %v408, %v404
        %v501 = vpack.c.bf16 %v409, %v405
        %v502 = vpack.c.bf16 %v414, %v410
        %v503 = vpack.c.bf16 %v415, %v411
        %v504 = vpack.c.bf16 %v416, %v412
        %v505 = vpack.c.bf16 %v417, %v413
        %v506 = vpack.c.bf16 %v422, %v418
        %v507 = vpack.c.bf16 %v423, %v419
        %v508 = vpack.c.bf16 %v424, %v420
        %v509 = vpack.c.bf16 %v425, %v421
        %v510 = vpack.c.bf16 %v430, %v426
        %v511 = vpack.c.bf16 %v431, %v427
        %v512 = vpack.c.bf16 %v432, %v428
        %v513 = vpack.c.bf16 %v433, %v429
        %v514 = vpack.c.bf16 %v438, %v434
        %v515 = vpack.c.bf16 %v439, %v435
        %v516 = vpack.c.bf16 %v440, %v436
        %v517 = vpack.c.bf16 %v441, %v437
        %v518 = vpack.c.bf16 %v446, %v442
        %v519 = vpack.c.bf16 %v447, %v443
        %v520 = vpack.c.bf16 %v448, %v444
        %v521 = vpack.c.bf16 %v449, %v445
        %v522 = vpack.c.bf16 %v454, %v450
        %v523 = vpack.c.bf16 %v455, %v451
        %v524 = vpack.c.bf16 %v456, %v452
        %v525 = vpack.c.bf16 %v457, %v453
        %v526 = vpack.c.bf16 %v462, %v458
        %v527 = vpack.c.bf16 %v463, %v459
        %v528 = vpack.c.bf16 %v464, %v460
        %v529 = vpack.c.bf16 %v465, %v461
        %v530 = vld [vmem:[#allocation5] sm:$0xff]
        %v531 = vld [vmem:[#allocation5 + $0x8] sm:$0xff]
        %v532 = vld [vmem:[#allocation5 + $0x10] sm:$0xff]
        %v533 = vld [vmem:[#allocation5 + $0x18] sm:$0xff]
        %v534 = vld [vmem:[#allocation5 + $0x20] sm:$0xff]
        %v535 = vld [vmem:[#allocation5 + $0x28] sm:$0xff]
        %v536 = vld [vmem:[#allocation5 + $0x30] sm:$0xff]
        %v537 = vld [vmem:[#allocation5 + $0x38] sm:$0xff]
        %v538 = vld [vmem:[#allocation5 + $0x40] sm:$0xff]
        %v539 = vld [vmem:[#allocation5 + $0x48] sm:$0xff]
        %v540 = vld [vmem:[#allocation5 + $0x50] sm:$0xff]
        %v541 = vld [vmem:[#allocation5 + $0x58] sm:$0xff]
        %v542 = vld [vmem:[#allocation5 + $0x60] sm:$0xff]
        %v543 = vld [vmem:[#allocation5 + $0x68] sm:$0xff]
        %v544 = vld [vmem:[#allocation5 + $0x70] sm:$0xff]
        %v545 = vld [vmem:[#allocation5 + $0x78] sm:$0xff]
        %v546 = vld [vmem:[#allocation5 + $0x80] sm:$0xff]
        %v547 = vld [vmem:[#allocation5 + $0x88] sm:$0xff]
        %v548 = vld [vmem:[#allocation5 + $0x90] sm:$0xff]
        %v549 = vld [vmem:[#allocation5 + $0x98] sm:$0xff]
        %v550 = vld [vmem:[#allocation5 + $0xa0] sm:$0xff]
        %v551 = vld [vmem:[#allocation5 + $0xa8] sm:$0xff]
        %v552 = vld [vmem:[#allocation5 + $0xb0] sm:$0xff]
        %v553 = vld [vmem:[#allocation5 + $0xb8] sm:$0xff]
        %v554 = vld [vmem:[#allocation5 + $0xc0] sm:$0xff]
        %v555 = vld [vmem:[#allocation5 + $0xc8] sm:$0xff]
        %v556 = vld [vmem:[#allocation5 + $0xd0] sm:$0xff]
        %v557 = vld [vmem:[#allocation5 + $0xd8] sm:$0xff]
        %v558 = vld [vmem:[#allocation5 + $0xe0] sm:$0xff]
        %v559 = vld [vmem:[#allocation5 + $0xe8] sm:$0xff]
        %v560 = vld [vmem:[#allocation5 + $0xf0] sm:$0xff]
        %v561 = vld [vmem:[#allocation5 + $0xf8] sm:$0xff]
        %v562 = vld [vmem:[#allocation5 + $0x100] sm:$0xff]
        %v563 = vld [vmem:[#allocation5 + $0x108] sm:$0xff]
        %v564 = vld [vmem:[#allocation5 + $0x110] sm:$0xff]
        %v565 = vld [vmem:[#allocation5 + $0x118] sm:$0xff]
        %v566 = vld [vmem:[#allocation5 + $0x120] sm:$0xff]
        %v567 = vld [vmem:[#allocation5 + $0x128] sm:$0xff]
        %v568 = vld [vmem:[#allocation5 + $0x130] sm:$0xff]
        %v569 = vld [vmem:[#allocation5 + $0x138] sm:$0xff]
        %v570 = vld [vmem:[#allocation5 + $0x140] sm:$0xff]
        %v571 = vld [vmem:[#allocation5 + $0x148] sm:$0xff]
        %v572 = vld [vmem:[#allocation5 + $0x150] sm:$0xff]
        %v573 = vld [vmem:[#allocation5 + $0x158] sm:$0xff]
        %v574 = vld [vmem:[#allocation5 + $0x160] sm:$0xff]
        %v575 = vld [vmem:[#allocation5 + $0x168] sm:$0xff]
        %v576 = vld [vmem:[#allocation5 + $0x170] sm:$0xff]
        %v577 = vld [vmem:[#allocation5 + $0x178] sm:$0xff]
        %v578 = vld [vmem:[#allocation5 + $0x180] sm:$0xff]
        %v579 = vld [vmem:[#allocation5 + $0x188] sm:$0xff]
        %v580 = vld [vmem:[#allocation5 + $0x190] sm:$0xff]
        %v581 = vld [vmem:[#allocation5 + $0x198] sm:$0xff]
        %v582 = vld [vmem:[#allocation5 + $0x1a0] sm:$0xff]
        %v583 = vld [vmem:[#allocation5 + $0x1a8] sm:$0xff]
        %v584 = vld [vmem:[#allocation5 + $0x1b0] sm:$0xff]
        %v585 = vld [vmem:[#allocation5 + $0x1b8] sm:$0xff]
        %v586 = vld [vmem:[#allocation5 + $0x1c0] sm:$0xff]
        %v587 = vld [vmem:[#allocation5 + $0x1c8] sm:$0xff]
        %v588 = vld [vmem:[#allocation5 + $0x1d0] sm:$0xff]
        %v589 = vld [vmem:[#allocation5 + $0x1d8] sm:$0xff]
        %v590 = vld [vmem:[#allocation5 + $0x1e0] sm:$0xff]
        %v591 = vld [vmem:[#allocation5 + $0x1e8] sm:$0xff]
        %v592 = vld [vmem:[#allocation5 + $0x1f0] sm:$0xff]
        %v593 = vld [vmem:[#allocation5 + $0x1f8] sm:$0xff]
        %v594 = vld [vmem:[%s2] sm:$0x3]
        %v596 = vperm.slane %v594, 0
        %v597 = vperm.slane %v594, 1
        %v664 = vunpack.c.l.b16 %v530
        %v665 = vunpack.c.h.b16 %v530
        %v666 = vunpack.c.l.b16 %v531
        %v667 = vunpack.c.h.b16 %v531
        %v668 = vunpack.c.l.b16 %v532
        %v669 = vunpack.c.h.b16 %v532
        %v670 = vunpack.c.l.b16 %v533
        %v671 = vunpack.c.h.b16 %v533
        %v672 = vunpack.c.l.b16 %v534
        %v673 = vunpack.c.h.b16 %v534
        %v674 = vunpack.c.l.b16 %v535
        %v675 = vunpack.c.h.b16 %v535
        %v676 = vunpack.c.l.b16 %v536
        %v677 = vunpack.c.h.b16 %v536
        %v678 = vunpack.c.l.b16 %v537
        %v679 = vunpack.c.h.b16 %v537
        %v680 = vunpack.c.l.b16 %v538
        %v681 = vunpack.c.h.b16 %v538
        %v682 = vunpack.c.l.b16 %v539
        %v683 = vunpack.c.h.b16 %v539
        %v684 = vunpack.c.l.b16 %v540
        %v685 = vunpack.c.h.b16 %v540
        %v686 = vunpack.c.l.b16 %v541
        %v687 = vunpack.c.h.b16 %v541
        %v688 = vunpack.c.l.b16 %v542
        %v689 = vunpack.c.h.b16 %v542
        %v690 = vunpack.c.l.b16 %v543
        %v691 = vunpack.c.h.b16 %v543
        %v692 = vunpack.c.l.b16 %v544
        %v693 = vunpack.c.h.b16 %v544
        %v694 = vunpack.c.l.b16 %v545
        %v695 = vunpack.c.h.b16 %v545
        %v696 = vunpack.c.l.b16 %v546
        %v697 = vunpack.c.h.b16 %v546
        %v698 = vunpack.c.l.b16 %v547
        %v699 = vunpack.c.h.b16 %v547
        %v700 = vunpack.c.l.b16 %v548
        %v701 = vunpack.c.h.b16 %v548
        %v702 = vunpack.c.l.b16 %v549
        %v703 = vunpack.c.h.b16 %v549
        %v704 = vunpack.c.l.b16 %v550
        %v705 = vunpack.c.h.b16 %v550
        %v706 = vunpack.c.l.b16 %v551
        %v707 = vunpack.c.h.b16 %v551
        %v708 = vunpack.c.l.b16 %v552
        %v709 = vunpack.c.h.b16 %v552
        %v710 = vunpack.c.l.b16 %v553
        %v711 = vunpack.c.h.b16 %v553
        %v712 = vunpack.c.l.b16 %v554
        %v713 = vunpack.c.h.b16 %v554
        %v714 = vunpack.c.l.b16 %v555
        %v715 = vunpack.c.h.b16 %v555
        %v716 = vunpack.c.l.b16 %v556
        %v717 = vunpack.c.h.b16 %v556
        %v718 = vunpack.c.l.b16 %v557
        %v719 = vunpack.c.h.b16 %v557
        %v720 = vunpack.c.l.b16 %v558
        %v721 = vunpack.c.h.b16 %v558
        %v722 = vunpack.c.l.b16 %v559
        %v723 = vunpack.c.h.b16 %v559
        %v724 = vunpack.c.l.b16 %v560
        %v725 = vunpack.c.h.b16 %v560
        %v726 = vunpack.c.l.b16 %v561
        %v727 = vunpack.c.h.b16 %v561
        %v728 = vunpack.c.l.b16 %v562
        %v729 = vunpack.c.h.b16 %v562
        %v730 = vunpack.c.l.b16 %v563
        %v731 = vunpack.c.h.b16 %v563
        %v732 = vunpack.c.l.b16 %v564
        %v733 = vunpack.c.h.b16 %v564
        %v734 = vunpack.c.l.b16 %v565
        %v735 = vunpack.c.h.b16 %v565
        %v736 = vunpack.c.l.b16 %v566
        %v737 = vunpack.c.h.b16 %v566
        %v738 = vunpack.c.l.b16 %v567
        %v739 = vunpack.c.h.b16 %v567
        %v740 = vunpack.c.l.b16 %v568
        %v741 = vunpack.c.h.b16 %v568
        %v742 = vunpack.c.l.b16 %v569
        %v743 = vunpack.c.h.b16 %v569
        %v744 = vunpack.c.l.b16 %v570
        %v745 = vunpack.c.h.b16 %v570
        %v746 = vunpack.c.l.b16 %v571
        %v747 = vunpack.c.h.b16 %v571
        %v748 = vunpack.c.l.b16 %v572
        %v749 = vunpack.c.h.b16 %v572
        %v750 = vunpack.c.l.b16 %v573
        %v751 = vunpack.c.h.b16 %v573
        %v752 = vunpack.c.l.b16 %v574
        %v753 = vunpack.c.h.b16 %v574
        %v754 = vunpack.c.l.b16 %v575
        %v755 = vunpack.c.h.b16 %v575
        %v756 = vunpack.c.l.b16 %v576
        %v757 = vunpack.c.h.b16 %v576
        %v758 = vunpack.c.l.b16 %v577
        %v759 = vunpack.c.h.b16 %v577
        %v760 = vunpack.c.l.b16 %v578
        %v761 = vunpack.c.h.b16 %v578
        %v762 = vunpack.c.l.b16 %v579
        %v763 = vunpack.c.h.b16 %v579
        %v764 = vunpack.c.l.b16 %v580
        %v765 = vunpack.c.h.b16 %v580
        %v766 = vunpack.c.l.b16 %v581
        %v767 = vunpack.c.h.b16 %v581
        %v768 = vunpack.c.l.b16 %v582
        %v769 = vunpack.c.h.b16 %v582
        %v770 = vunpack.c.l.b16 %v583
        %v771 = vunpack.c.h.b16 %v583
        %v772 = vunpack.c.l.b16 %v584
        %v773 = vunpack.c.h.b16 %v584
        %v774 = vunpack.c.l.b16 %v585
        %v775 = vunpack.c.h.b16 %v585
        %v776 = vunpack.c.l.b16 %v586
        %v777 = vunpack.c.h.b16 %v586
        %v778 = vunpack.c.l.b16 %v587
        %v779 = vunpack.c.h.b16 %v587
        %v780 = vunpack.c.l.b16 %v588
        %v781 = vunpack.c.h.b16 %v588
        %v782 = vunpack.c.l.b16 %v589
        %v783 = vunpack.c.h.b16 %v589
        %v784 = vunpack.c.l.b16 %v590
        %v785 = vunpack.c.h.b16 %v590
        %v786 = vunpack.c.l.b16 %v591
        %v787 = vunpack.c.h.b16 %v591
        %v788 = vunpack.c.l.b16 %v592
        %v789 = vunpack.c.h.b16 %v592
        %v790 = vunpack.c.l.b16 %v593
        %v791 = vunpack.c.h.b16 %v593
        %v792 = vpack.c.b16 %v666, %v664
        %v793 = vpack.c.b16 %v667, %v665
        %v794 = vpack.c.b16 %v670, %v668
        %v795 = vpack.c.b16 %v671, %v669
        %v796 = vpack.c.b16 %v674, %v672
        %v797 = vpack.c.b16 %v675, %v673
        %v798 = vpack.c.b16 %v678, %v676
        %v799 = vpack.c.b16 %v679, %v677
        %v800 = vpack.c.b16 %v682, %v680
        %v801 = vpack.c.b16 %v683, %v681
        %v802 = vpack.c.b16 %v686, %v684
        %v803 = vpack.c.b16 %v687, %v685
        %v804 = vpack.c.b16 %v690, %v688
        %v805 = vpack.c.b16 %v691, %v689
        %v806 = vpack.c.b16 %v694, %v692
        %v807 = vpack.c.b16 %v695, %v693
        %v808 = vpack.c.b16 %v698, %v696
        %v809 = vpack.c.b16 %v699, %v697
        %v810 = vpack.c.b16 %v702, %v700
        %v811 = vpack.c.b16 %v703, %v701
        %v812 = vpack.c.b16 %v706, %v704
        %v813 = vpack.c.b16 %v707, %v705
        %v814 = vpack.c.b16 %v710, %v708
        %v815 = vpack.c.b16 %v711, %v709
        %v816 = vpack.c.b16 %v714, %v712
        %v817 = vpack.c.b16 %v715, %v713
        %v818 = vpack.c.b16 %v718, %v716
        %v819 = vpack.c.b16 %v719, %v717
        %v820 = vpack.c.b16 %v722, %v720
        %v821 = vpack.c.b16 %v723, %v721
        %v822 = vpack.c.b16 %v726, %v724
        %v823 = vpack.c.b16 %v727, %v725
        %v824 = vpack.c.b16 %v730, %v728
        %v825 = vpack.c.b16 %v731, %v729
        %v826 = vpack.c.b16 %v734, %v732
        %v827 = vpack.c.b16 %v735, %v733
        %v828 = vpack.c.b16 %v738, %v736
        %v829 = vpack.c.b16 %v739, %v737
        %v830 = vpack.c.b16 %v742, %v740
        %v831 = vpack.c.b16 %v743, %v741
        %v832 = vpack.c.b16 %v746, %v744
        %v833 = vpack.c.b16 %v747, %v745
        %v834 = vpack.c.b16 %v750, %v748
        %v835 = vpack.c.b16 %v751, %v749
        %v836 = vpack.c.b16 %v754, %v752
        %v837 = vpack.c.b16 %v755, %v753
        %v838 = vpack.c.b16 %v758, %v756
        %v839 = vpack.c.b16 %v759, %v757
        %v840 = vpack.c.b16 %v762, %v760
        %v841 = vpack.c.b16 %v763, %v761
        %v842 = vpack.c.b16 %v766, %v764
        %v843 = vpack.c.b16 %v767, %v765
        %v844 = vpack.c.b16 %v770, %v768
        %v845 = vpack.c.b16 %v771, %v769
        %v846 = vpack.c.b16 %v774, %v772
        %v847 = vpack.c.b16 %v775, %v773
        %v848 = vpack.c.b16 %v778, %v776
        %v849 = vpack.c.b16 %v779, %v777
        %v850 = vpack.c.b16 %v782, %v780
        %v851 = vpack.c.b16 %v783, %v781
        %v852 = vpack.c.b16 %v786, %v784
        %v853 = vpack.c.b16 %v787, %v785
        %v854 = vpack.c.b16 %v790, %v788
        %v855 = vpack.c.b16 %v791, %v789
        %920 = vmatpush.bf16.msra.mxu0 %v806
        %921 = vmatpush.bf16.msra.mxu0 %v804
        %922 = vmatpush.bf16.msra.mxu0 %v802
        %923 = vmatpush.bf16.msra.mxu0 %v800
        %924 = vmatpush.bf16.msra.mxu0 %v798
        %925 = vmatpush.bf16.msra.mxu0 %v796
        %926 = vmatpush.bf16.msra.mxu0 %v794
        %927 = vmatpush.bf16.msra.mxu0 %v792
        %928 = vmatmul.bf16.gmra.mxu0 %v466
        %v929 = vpop.f32.mrf.mxu0
        %v930 = vadd.f32 %v596, %v929
        %v931 = vpop.f32.mrf.mxu0
        %v932 = vadd.f32 %v596, %v931
        %933 = vmatmul.bf16.gmra.mxu0 %v470
        %v934 = vpop.f32.mrf.mxu0
        %v935 = vadd.f32 %v596, %v934
        %v936 = vpop.f32.mrf.mxu0
        %v937 = vadd.f32 %v596, %v936
        %938 = vmatmul.bf16.gmra.mxu0 %v474
        %v939 = vpop.f32.mrf.mxu0
        %v940 = vadd.f32 %v596, %v939
        %v941 = vpop.f32.mrf.mxu0
        %v942 = vadd.f32 %v596, %v941
        %943 = vmatmul.bf16.gmra.mxu0 %v478
        %v944 = vpop.f32.mrf.mxu0
        %v945 = vadd.f32 %v596, %v944
        %v946 = vpop.f32.mrf.mxu0
        %v947 = vadd.f32 %v596, %v946
        %948 = vmatmul.bf16.gmra.mxu0 %v482
        %v949 = vpop.f32.mrf.mxu0
        %v950 = vadd.f32 %v596, %v949
        %v951 = vpop.f32.mrf.mxu0
        %v952 = vadd.f32 %v596, %v951
        %953 = vmatmul.bf16.gmra.mxu0 %v486
        %v954 = vpop.f32.mrf.mxu0
        %v955 = vadd.f32 %v596, %v954
        %v956 = vpop.f32.mrf.mxu0
        %v957 = vadd.f32 %v596, %v956
        %958 = vmatmul.bf16.gmra.mxu0 %v490
        %v959 = vpop.f32.mrf.mxu0
        %v960 = vadd.f32 %v596, %v959
        %v961 = vpop.f32.mrf.mxu0
        %v962 = vadd.f32 %v596, %v961
        %963 = vmatmul.bf16.gmra.mxu0 %v494
        %v964 = vpop.f32.mrf.mxu0
        %v965 = vadd.f32 %v596, %v964
        %v966 = vpop.f32.mrf.mxu0
        %v967 = vadd.f32 %v596, %v966
        %968 = vmatmul.bf16.gmra.mxu0 %v498
        %v969 = vpop.f32.mrf.mxu0
        %v970 = vadd.f32 %v596, %v969
        %v971 = vpop.f32.mrf.mxu0
        %v972 = vadd.f32 %v596, %v971
        %973 = vmatmul.bf16.gmra.mxu0 %v502
        %v974 = vpop.f32.mrf.mxu0
        %v975 = vadd.f32 %v596, %v974
        %v976 = vpop.f32.mrf.mxu0
        %v977 = vadd.f32 %v596, %v976
        %978 = vmatmul.bf16.gmra.mxu0 %v506
        %v979 = vpop.f32.mrf.mxu0
        %v980 = vadd.f32 %v596, %v979
        %v981 = vpop.f32.mrf.mxu0
        %v982 = vadd.f32 %v596, %v981
        %983 = vmatmul.bf16.gmra.mxu0 %v510
        %v984 = vpop.f32.mrf.mxu0
        %v985 = vadd.f32 %v596, %v984
        %v986 = vpop.f32.mrf.mxu0
        %v987 = vadd.f32 %v596, %v986
        %988 = vmatmul.bf16.gmra.mxu0 %v514
        %v989 = vpop.f32.mrf.mxu0
        %v990 = vadd.f32 %v596, %v989
        %v991 = vpop.f32.mrf.mxu0
        %v992 = vadd.f32 %v596, %v991
        %993 = vmatmul.bf16.gmra.mxu0 %v518
        %v994 = vpop.f32.mrf.mxu0
        %v995 = vadd.f32 %v596, %v994
        %v996 = vpop.f32.mrf.mxu0
        %v997 = vadd.f32 %v596, %v996
        %998 = vmatmul.bf16.gmra.mxu0 %v522
        %v999 = vpop.f32.mrf.mxu0
        %v1000 = vadd.f32 %v596, %v999
        %v1001 = vpop.f32.mrf.mxu0
        %v1002 = vadd.f32 %v596, %v1001
        %1003 = vmatmul.bf16.gmra.mxu0 %v526
        %v1004 = vpop.f32.mrf.mxu0
        %v1005 = vadd.f32 %v596, %v1004
        %v1006 = vpop.f32.mrf.mxu0
        %v1007 = vadd.f32 %v596, %v1006
        %1008 = vdwg.mxu0
        %1009 = vmatpush.bf16.msra.mxu0 %v822
        %1010 = vmatpush.bf16.msra.mxu0 %v820
        %1011 = vmatpush.bf16.msra.mxu0 %v818
        %1012 = vmatpush.bf16.msra.mxu0 %v816
        %1013 = vmatpush.bf16.msra.mxu0 %v814
        %1014 = vmatpush.bf16.msra.mxu0 %v812
        %1015 = vmatpush.bf16.msra.mxu0 %v810
        %1016 = vmatpush.bf16.msra.mxu0 %v808
        %1017 = vmatmul.bf16.gmra.mxu0 %v467
        %v1018 = vpop.f32.mrf.mxu0
        %v1019 = vadd.f32 %v930, %v1018
        %v1020 = vpop.f32.mrf.mxu0
        %v1021 = vadd.f32 %v932, %v1020
        %1022 = vmatmul.bf16.gmra.mxu0 %v471
        %v1023 = vpop.f32.mrf.mxu0
        %v1024 = vadd.f32 %v935, %v1023
        %v1025 = vpop.f32.mrf.mxu0
        %v1026 = vadd.f32 %v937, %v1025
        %1027 = vmatmul.bf16.gmra.mxu0 %v475
        %v1028 = vpop.f32.mrf.mxu0
        %v1029 = vadd.f32 %v940, %v1028
        %v1030 = vpop.f32.mrf.mxu0
        %v1031 = vadd.f32 %v942, %v1030
        %1032 = vmatmul.bf16.gmra.mxu0 %v479
        %v1033 = vpop.f32.mrf.mxu0
        %v1034 = vadd.f32 %v945, %v1033
        %v1035 = vpop.f32.mrf.mxu0
        %v1036 = vadd.f32 %v947, %v1035
        %1037 = vmatmul.bf16.gmra.mxu0 %v483
        %v1038 = vpop.f32.mrf.mxu0
        %v1039 = vadd.f32 %v950, %v1038
        %v1040 = vpop.f32.mrf.mxu0
        %v1041 = vadd.f32 %v952, %v1040
        %1042 = vmatmul.bf16.gmra.mxu0 %v487
        %v1043 = vpop.f32.mrf.mxu0
        %v1044 = vadd.f32 %v955, %v1043
        %v1045 = vpop.f32.mrf.mxu0
        %v1046 = vadd.f32 %v957, %v1045
        %1047 = vmatmul.bf16.gmra.mxu0 %v491
        %v1048 = vpop.f32.mrf.mxu0
        %v1049 = vadd.f32 %v960, %v1048
        %v1050 = vpop.f32.mrf.mxu0
        %v1051 = vadd.f32 %v962, %v1050
        %1052 = vmatmul.bf16.gmra.mxu0 %v495
        %v1053 = vpop.f32.mrf.mxu0
        %v1054 = vadd.f32 %v965, %v1053
        %v1055 = vpop.f32.mrf.mxu0
        %v1056 = vadd.f32 %v967, %v1055
        %1057 = vmatmul.bf16.gmra.mxu0 %v499
        %v1058 = vpop.f32.mrf.mxu0
        %v1059 = vadd.f32 %v970, %v1058
        %v1060 = vpop.f32.mrf.mxu0
        %v1061 = vadd.f32 %v972, %v1060
        %1062 = vmatmul.bf16.gmra.mxu0 %v503
        %v1063 = vpop.f32.mrf.mxu0
        %v1064 = vadd.f32 %v975, %v1063
        %v1065 = vpop.f32.mrf.mxu0
        %v1066 = vadd.f32 %v977, %v1065
        %1067 = vmatmul.bf16.gmra.mxu0 %v507
        %v1068 = vpop.f32.mrf.mxu0
        %v1069 = vadd.f32 %v980, %v1068
        %v1070 = vpop.f32.mrf.mxu0
        %v1071 = vadd.f32 %v982, %v1070
        %1072 = vmatmul.bf16.gmra.mxu0 %v511
        %v1073 = vpop.f32.mrf.mxu0
        %v1074 = vadd.f32 %v985, %v1073
        %v1075 = vpop.f32.mrf.mxu0
        %v1076 = vadd.f32 %v987, %v1075
        %1077 = vmatmul.bf16.gmra.mxu0 %v515
        %v1078 = vpop.f32.mrf.mxu0
        %v1079 = vadd.f32 %v990, %v1078
        %v1080 = vpop.f32.mrf.mxu0
        %v1081 = vadd.f32 %v992, %v1080
        %1082 = vmatmul.bf16.gmra.mxu0 %v519
        %v1083 = vpop.f32.mrf.mxu0
        %v1084 = vadd.f32 %v995, %v1083
        %v1085 = vpop.f32.mrf.mxu0
        %v1086 = vadd.f32 %v997, %v1085
        %1087 = vmatmul.bf16.gmra.mxu0 %v523
        %v1088 = vpop.f32.mrf.mxu0
        %v1089 = vadd.f32 %v1000, %v1088
        %v1090 = vpop.f32.mrf.mxu0
        %v1091 = vadd.f32 %v1002, %v1090
        %1092 = vmatmul.bf16.gmra.mxu0 %v527
        %v1093 = vpop.f32.mrf.mxu0
        %v1094 = vadd.f32 %v1005, %v1093
        %v1095 = vpop.f32.mrf.mxu0
        %v1096 = vadd.f32 %v1007, %v1095
        %1097 = vdwg.mxu0
        %1098 = vmatpush.bf16.msra.mxu0 %v838
        %1099 = vmatpush.bf16.msra.mxu0 %v836
        %1100 = vmatpush.bf16.msra.mxu0 %v834
        %1101 = vmatpush.bf16.msra.mxu0 %v832
        %1102 = vmatpush.bf16.msra.mxu0 %v830
        %1103 = vmatpush.bf16.msra.mxu0 %v828
        %1104 = vmatpush.bf16.msra.mxu0 %v826
        %1105 = vmatpush.bf16.msra.mxu0 %v824
        %1106 = vmatmul.bf16.gmra.mxu0 %v468
        %v1107 = vpop.f32.mrf.mxu0
        %v1108 = vadd.f32 %v1019, %v1107
        %v1109 = vpop.f32.mrf.mxu0
        %v1110 = vadd.f32 %v1021, %v1109
        %1111 = vmatmul.bf16.gmra.mxu0 %v472
        %v1112 = vpop.f32.mrf.mxu0
        %v1113 = vadd.f32 %v1024, %v1112
        %v1114 = vpop.f32.mrf.mxu0
        %v1115 = vadd.f32 %v1026, %v1114
        %1116 = vmatmul.bf16.gmra.mxu0 %v476
        %v1117 = vpop.f32.mrf.mxu0
        %v1118 = vadd.f32 %v1029, %v1117
        %v1119 = vpop.f32.mrf.mxu0
        %v1120 = vadd.f32 %v1031, %v1119
        %1121 = vmatmul.bf16.gmra.mxu0 %v480
        %v1122 = vpop.f32.mrf.mxu0
        %v1123 = vadd.f32 %v1034, %v1122
        %v1124 = vpop.f32.mrf.mxu0
        %v1125 = vadd.f32 %v1036, %v1124
        %1126 = vmatmul.bf16.gmra.mxu0 %v484
        %v1127 = vpop.f32.mrf.mxu0
        %v1128 = vadd.f32 %v1039, %v1127
        %v1129 = vpop.f32.mrf.mxu0
        %v1130 = vadd.f32 %v1041, %v1129
        %1131 = vmatmul.bf16.gmra.mxu0 %v488
        %v1132 = vpop.f32.mrf.mxu0
        %v1133 = vadd.f32 %v1044, %v1132
        %v1134 = vpop.f32.mrf.mxu0
        %v1135 = vadd.f32 %v1046, %v1134
        %1136 = vmatmul.bf16.gmra.mxu0 %v492
        %v1137 = vpop.f32.mrf.mxu0
        %v1138 = vadd.f32 %v1049, %v1137
        %v1139 = vpop.f32.mrf.mxu0
        %v1140 = vadd.f32 %v1051, %v1139
        %1141 = vmatmul.bf16.gmra.mxu0 %v496
        %v1142 = vpop.f32.mrf.mxu0
        %v1143 = vadd.f32 %v1054, %v1142
        %v1144 = vpop.f32.mrf.mxu0
        %v1145 = vadd.f32 %v1056, %v1144
        %1146 = vmatmul.bf16.gmra.mxu0 %v500
        %v1147 = vpop.f32.mrf.mxu0
        %v1148 = vadd.f32 %v1059, %v1147
        %v1149 = vpop.f32.mrf.mxu0
        %v1150 = vadd.f32 %v1061, %v1149
        %1151 = vmatmul.bf16.gmra.mxu0 %v504
        %v1152 = vpop.f32.mrf.mxu0
        %v1153 = vadd.f32 %v1064, %v1152
        %v1154 = vpop.f32.mrf.mxu0
        %v1155 = vadd.f32 %v1066, %v1154
        %1156 = vmatmul.bf16.gmra.mxu0 %v508
        %v1157 = vpop.f32.mrf.mxu0
        %v1158 = vadd.f32 %v1069, %v1157
        %v1159 = vpop.f32.mrf.mxu0
        %v1160 = vadd.f32 %v1071, %v1159
        %1161 = vmatmul.bf16.gmra.mxu0 %v512
        %v1162 = vpop.f32.mrf.mxu0
        %v1163 = vadd.f32 %v1074, %v1162
        %v1164 = vpop.f32.mrf.mxu0
        %v1165 = vadd.f32 %v1076, %v1164
        %1166 = vmatmul.bf16.gmra.mxu0 %v516
        %v1167 = vpop.f32.mrf.mxu0
        %v1168 = vadd.f32 %v1079, %v1167
        %v1169 = vpop.f32.mrf.mxu0
        %v1170 = vadd.f32 %v1081, %v1169
        %1171 = vmatmul.bf16.gmra.mxu0 %v520
        %v1172 = vpop.f32.mrf.mxu0
        %v1173 = vadd.f32 %v1084, %v1172
        %v1174 = vpop.f32.mrf.mxu0
        %v1175 = vadd.f32 %v1086, %v1174
        %1176 = vmatmul.bf16.gmra.mxu0 %v524
        %v1177 = vpop.f32.mrf.mxu0
        %v1178 = vadd.f32 %v1089, %v1177
        %v1179 = vpop.f32.mrf.mxu0
        %v1180 = vadd.f32 %v1091, %v1179
        %1181 = vmatmul.bf16.gmra.mxu0 %v528
        %v1182 = vpop.f32.mrf.mxu0
        %v1183 = vadd.f32 %v1094, %v1182
        %v1184 = vpop.f32.mrf.mxu0
        %v1185 = vadd.f32 %v1096, %v1184
        %1186 = vdwg.mxu0
        %1187 = vmatpush.bf16.msra.mxu0 %v854
        %1188 = vmatpush.bf16.msra.mxu0 %v852
        %1189 = vmatpush.bf16.msra.mxu0 %v850
        %1190 = vmatpush.bf16.msra.mxu0 %v848
        %1191 = vmatpush.bf16.msra.mxu0 %v846
        %1192 = vmatpush.bf16.msra.mxu0 %v844
        %1193 = vmatpush.bf16.msra.mxu0 %v842
        %1194 = vmatpush.bf16.msra.mxu0 %v840
        %1195 = vmatmul.bf16.gmra.mxu0 %v469
        %v1196 = vpop.f32.mrf.mxu0
        %v1197 = vadd.f32 %v1108, %v1196
        %v1198 = vpop.f32.mrf.mxu0
        %v1199 = vadd.f32 %v1110, %v1198
        %1200 = vmatmul.bf16.gmra.mxu0 %v473
        %v1201 = vpop.f32.mrf.mxu0
        %v1202 = vadd.f32 %v1113, %v1201
        %v1203 = vpop.f32.mrf.mxu0
        %v1204 = vadd.f32 %v1115, %v1203
        %1205 = vmatmul.bf16.gmra.mxu0 %v477
        %v1206 = vpop.f32.mrf.mxu0
        %v1207 = vadd.f32 %v1118, %v1206
        %v1208 = vpop.f32.mrf.mxu0
        %v1209 = vadd.f32 %v1120, %v1208
        %1210 = vmatmul.bf16.gmra.mxu0 %v481
        %v1211 = vpop.f32.mrf.mxu0
        %v1212 = vadd.f32 %v1123, %v1211
        %v1213 = vpop.f32.mrf.mxu0
        %v1214 = vadd.f32 %v1125, %v1213
        %1215 = vmatmul.bf16.gmra.mxu0 %v485
        %v1216 = vpop.f32.mrf.mxu0
        %v1217 = vadd.f32 %v1128, %v1216
        %v1218 = vpop.f32.mrf.mxu0
        %v1219 = vadd.f32 %v1130, %v1218
        %1220 = vmatmul.bf16.gmra.mxu0 %v489
        %v1221 = vpop.f32.mrf.mxu0
        %v1222 = vadd.f32 %v1133, %v1221
        %v1223 = vpop.f32.mrf.mxu0
        %v1224 = vadd.f32 %v1135, %v1223
        %1225 = vmatmul.bf16.gmra.mxu0 %v493
        %v1226 = vpop.f32.mrf.mxu0
        %v1227 = vadd.f32 %v1138, %v1226
        %v1228 = vpop.f32.mrf.mxu0
        %v1229 = vadd.f32 %v1140, %v1228
        %1230 = vmatmul.bf16.gmra.mxu0 %v497
        %v1231 = vpop.f32.mrf.mxu0
        %v1232 = vadd.f32 %v1143, %v1231
        %v1233 = vpop.f32.mrf.mxu0
        %v1234 = vadd.f32 %v1145, %v1233
        %1235 = vmatmul.bf16.gmra.mxu0 %v501
        %v1236 = vpop.f32.mrf.mxu0
        %v1237 = vadd.f32 %v1148, %v1236
        %v1238 = vpop.f32.mrf.mxu0
        %v1239 = vadd.f32 %v1150, %v1238
        %1240 = vmatmul.bf16.gmra.mxu0 %v505
        %v1241 = vpop.f32.mrf.mxu0
        %v1242 = vadd.f32 %v1153, %v1241
        %v1243 = vpop.f32.mrf.mxu0
        %v1244 = vadd.f32 %v1155, %v1243
        %1245 = vmatmul.bf16.gmra.mxu0 %v509
        %v1246 = vpop.f32.mrf.mxu0
        %v1247 = vadd.f32 %v1158, %v1246
        %v1248 = vpop.f32.mrf.mxu0
        %v1249 = vadd.f32 %v1160, %v1248
        %1250 = vmatmul.bf16.gmra.mxu0 %v513
        %v1251 = vpop.f32.mrf.mxu0
        %v1252 = vadd.f32 %v1163, %v1251
        %v1253 = vpop.f32.mrf.mxu0
        %v1254 = vadd.f32 %v1165, %v1253
        %1255 = vmatmul.bf16.gmra.mxu0 %v517
        %v1256 = vpop.f32.mrf.mxu0
        %v1257 = vadd.f32 %v1168, %v1256
        %v1258 = vpop.f32.mrf.mxu0
        %v1259 = vadd.f32 %v1170, %v1258
        %1260 = vmatmul.bf16.gmra.mxu0 %v521
        %v1261 = vpop.f32.mrf.mxu0
        %v1262 = vadd.f32 %v1173, %v1261
        %v1263 = vpop.f32.mrf.mxu0
        %v1264 = vadd.f32 %v1175, %v1263
        %1265 = vmatmul.bf16.gmra.mxu0 %v525
        %v1266 = vpop.f32.mrf.mxu0
        %v1267 = vadd.f32 %v1178, %v1266
        %v1268 = vpop.f32.mrf.mxu0
        %v1269 = vadd.f32 %v1180, %v1268
        %1270 = vmatmul.bf16.gmra.mxu0 %v529
        %v1271 = vpop.f32.mrf.mxu0
        %v1272 = vadd.f32 %v1183, %v1271
        %v1273 = vpop.f32.mrf.mxu0
        %v1274 = vadd.f32 %v1185, %v1273
        %1275 = vdwg.mxu0
        %1276 = vmatpush.bf16.msra.mxu0 %v807
        %1277 = vmatpush.bf16.msra.mxu0 %v805
        %1278 = vmatpush.bf16.msra.mxu0 %v803
        %1279 = vmatpush.bf16.msra.mxu0 %v801
        %1280 = vmatpush.bf16.msra.mxu0 %v799
        %1281 = vmatpush.bf16.msra.mxu0 %v797
        %1282 = vmatpush.bf16.msra.mxu0 %v795
        %1283 = vmatpush.bf16.msra.mxu0 %v793
        %1284 = vmatmul.bf16.gmra.mxu0 %v466
        %v1285 = vpop.f32.mrf.mxu0
        %v1286 = vadd.f32 %v597, %v1285
        %v1287 = vpop.f32.mrf.mxu0
        %v1288 = vadd.f32 %v597, %v1287
        %1289 = vmatmul.bf16.gmra.mxu0 %v470
        %v1290 = vpop.f32.mrf.mxu0
        %v1291 = vadd.f32 %v597, %v1290
        %v1292 = vpop.f32.mrf.mxu0
        %v1293 = vadd.f32 %v597, %v1292
        %1294 = vmatmul.bf16.gmra.mxu0 %v474
        %v1295 = vpop.f32.mrf.mxu0
        %v1296 = vadd.f32 %v597, %v1295
        %v1297 = vpop.f32.mrf.mxu0
        %v1298 = vadd.f32 %v597, %v1297
        %1299 = vmatmul.bf16.gmra.mxu0 %v478
        %v1300 = vpop.f32.mrf.mxu0
        %v1301 = vadd.f32 %v597, %v1300
        %v1302 = vpop.f32.mrf.mxu0
        %v1303 = vadd.f32 %v597, %v1302
        %1304 = vmatmul.bf16.gmra.mxu0 %v482
        %v1305 = vpop.f32.mrf.mxu0
        %v1306 = vadd.f32 %v597, %v1305
        %v1307 = vpop.f32.mrf.mxu0
        %v1308 = vadd.f32 %v597, %v1307
        %1309 = vmatmul.bf16.gmra.mxu0 %v486
        %v1310 = vpop.f32.mrf.mxu0
        %v1311 = vadd.f32 %v597, %v1310
        %v1312 = vpop.f32.mrf.mxu0
        %v1313 = vadd.f32 %v597, %v1312
        %1314 = vmatmul.bf16.gmra.mxu0 %v490
        %v1315 = vpop.f32.mrf.mxu0
        %v1316 = vadd.f32 %v597, %v1315
        %v1317 = vpop.f32.mrf.mxu0
        %v1318 = vadd.f32 %v597, %v1317
        %1319 = vmatmul.bf16.gmra.mxu0 %v494
        %v1320 = vpop.f32.mrf.mxu0
        %v1321 = vadd.f32 %v597, %v1320
        %v1322 = vpop.f32.mrf.mxu0
        %v1323 = vadd.f32 %v597, %v1322
        %1324 = vmatmul.bf16.gmra.mxu0 %v498
        %v1325 = vpop.f32.mrf.mxu0
        %v1326 = vadd.f32 %v597, %v1325
        %v1327 = vpop.f32.mrf.mxu0
        %v1328 = vadd.f32 %v597, %v1327
        %1329 = vmatmul.bf16.gmra.mxu0 %v502
        %v1330 = vpop.f32.mrf.mxu0
        %v1331 = vadd.f32 %v597, %v1330
        %v1332 = vpop.f32.mrf.mxu0
        %v1333 = vadd.f32 %v597, %v1332
        %1334 = vmatmul.bf16.gmra.mxu0 %v506
        %v1335 = vpop.f32.mrf.mxu0
        %v1336 = vadd.f32 %v597, %v1335
        %v1337 = vpop.f32.mrf.mxu0
        %v1338 = vadd.f32 %v597, %v1337
        %1339 = vmatmul.bf16.gmra.mxu0 %v510
        %v1340 = vpop.f32.mrf.mxu0
        %v1341 = vadd.f32 %v597, %v1340
        %v1342 = vpop.f32.mrf.mxu0
        %v1343 = vadd.f32 %v597, %v1342
        %1344 = vmatmul.bf16.gmra.mxu0 %v514
        %v1345 = vpop.f32.mrf.mxu0
        %v1346 = vadd.f32 %v597, %v1345
        %v1347 = vpop.f32.mrf.mxu0
        %v1348 = vadd.f32 %v597, %v1347
        %1349 = vmatmul.bf16.gmra.mxu0 %v518
        %v1350 = vpop.f32.mrf.mxu0
        %v1351 = vadd.f32 %v597, %v1350
        %v1352 = vpop.f32.mrf.mxu0
        %v1353 = vadd.f32 %v597, %v1352
        %1354 = vmatmul.bf16.gmra.mxu0 %v522
        %v1355 = vpop.f32.mrf.mxu0
        %v1356 = vadd.f32 %v597, %v1355
        %v1357 = vpop.f32.mrf.mxu0
        %v1358 = vadd.f32 %v597, %v1357
        %1359 = vmatmul.bf16.gmra.mxu0 %v526
        %v1360 = vpop.f32.mrf.mxu0
        %v1361 = vadd.f32 %v597, %v1360
        %v1362 = vpop.f32.mrf.mxu0
        %v1363 = vadd.f32 %v597, %v1362
        %1364 = vdwg.mxu0
        %1365 = vmatpush.bf16.msra.mxu0 %v823
        %1366 = vmatpush.bf16.msra.mxu0 %v821
        %1367 = vmatpush.bf16.msra.mxu0 %v819
        %1368 = vmatpush.bf16.msra.mxu0 %v817
        %1369 = vmatpush.bf16.msra.mxu0 %v815
        %1370 = vmatpush.bf16.msra.mxu0 %v813
        %1371 = vmatpush.bf16.msra.mxu0 %v811
        %1372 = vmatpush.bf16.msra.mxu0 %v809
        %1373 = vmatmul.bf16.gmra.mxu0 %v467
        %v1374 = vpop.f32.mrf.mxu0
        %v1375 = vadd.f32 %v1286, %v1374
        %v1376 = vpop.f32.mrf.mxu0
        %v1377 = vadd.f32 %v1288, %v1376
        %1378 = vmatmul.bf16.gmra.mxu0 %v471
        %v1379 = vpop.f32.mrf.mxu0
        %v1380 = vadd.f32 %v1291, %v1379
        %v1381 = vpop.f32.mrf.mxu0
        %v1382 = vadd.f32 %v1293, %v1381
        %1383 = vmatmul.bf16.gmra.mxu0 %v475
        %v1384 = vpop.f32.mrf.mxu0
        %v1385 = vadd.f32 %v1296, %v1384
        %v1386 = vpop.f32.mrf.mxu0
        %v1387 = vadd.f32 %v1298, %v1386
        %1388 = vmatmul.bf16.gmra.mxu0 %v479
        %v1389 = vpop.f32.mrf.mxu0
        %v1390 = vadd.f32 %v1301, %v1389
        %v1391 = vpop.f32.mrf.mxu0
        %v1392 = vadd.f32 %v1303, %v1391
        %1393 = vmatmul.bf16.gmra.mxu0 %v483
        %v1394 = vpop.f32.mrf.mxu0
        %v1395 = vadd.f32 %v1306, %v1394
        %v1396 = vpop.f32.mrf.mxu0
        %v1397 = vadd.f32 %v1308, %v1396
        %1398 = vmatmul.bf16.gmra.mxu0 %v487
        %v1399 = vpop.f32.mrf.mxu0
        %v1400 = vadd.f32 %v1311, %v1399
        %v1401 = vpop.f32.mrf.mxu0
        %v1402 = vadd.f32 %v1313, %v1401
        %1403 = vmatmul.bf16.gmra.mxu0 %v491
        %v1404 = vpop.f32.mrf.mxu0
        %v1405 = vadd.f32 %v1316, %v1404
        %v1406 = vpop.f32.mrf.mxu0
        %v1407 = vadd.f32 %v1318, %v1406
        %1408 = vmatmul.bf16.gmra.mxu0 %v495
        %v1409 = vpop.f32.mrf.mxu0
        %v1410 = vadd.f32 %v1321, %v1409
        %v1411 = vpop.f32.mrf.mxu0
        %v1412 = vadd.f32 %v1323, %v1411
        %1413 = vmatmul.bf16.gmra.mxu0 %v499
        %v1414 = vpop.f32.mrf.mxu0
        %v1415 = vadd.f32 %v1326, %v1414
        %v1416 = vpop.f32.mrf.mxu0
        %v1417 = vadd.f32 %v1328, %v1416
        %1418 = vmatmul.bf16.gmra.mxu0 %v503
        %v1419 = vpop.f32.mrf.mxu0
        %v1420 = vadd.f32 %v1331, %v1419
        %v1421 = vpop.f32.mrf.mxu0
        %v1422 = vadd.f32 %v1333, %v1421
        %1423 = vmatmul.bf16.gmra.mxu0 %v507
        %v1424 = vpop.f32.mrf.mxu0
        %v1425 = vadd.f32 %v1336, %v1424
        %v1426 = vpop.f32.mrf.mxu0
        %v1427 = vadd.f32 %v1338, %v1426
        %1428 = vmatmul.bf16.gmra.mxu0 %v511
        %v1429 = vpop.f32.mrf.mxu0
        %v1430 = vadd.f32 %v1341, %v1429
        %v1431 = vpop.f32.mrf.mxu0
        %v1432 = vadd.f32 %v1343, %v1431
        %1433 = vmatmul.bf16.gmra.mxu0 %v515
        %v1434 = vpop.f32.mrf.mxu0
        %v1435 = vadd.f32 %v1346, %v1434
        %v1436 = vpop.f32.mrf.mxu0
        %v1437 = vadd.f32 %v1348, %v1436
        %1438 = vmatmul.bf16.gmra.mxu0 %v519
        %v1439 = vpop.f32.mrf.mxu0
        %v1440 = vadd.f32 %v1351, %v1439
        %v1441 = vpop.f32.mrf.mxu0
        %v1442 = vadd.f32 %v1353, %v1441
        %1443 = vmatmul.bf16.gmra.mxu0 %v523
        %v1444 = vpop.f32.mrf.mxu0
        %v1445 = vadd.f32 %v1356, %v1444
        %v1446 = vpop.f32.mrf.mxu0
        %v1447 = vadd.f32 %v1358, %v1446
        %1448 = vmatmul.bf16.gmra.mxu0 %v527
        %v1449 = vpop.f32.mrf.mxu0
        %v1450 = vadd.f32 %v1361, %v1449
        %v1451 = vpop.f32.mrf.mxu0
        %v1452 = vadd.f32 %v1363, %v1451
        %1453 = vdwg.mxu0
        %1454 = vmatpush.bf16.msra.mxu0 %v839
        %1455 = vmatpush.bf16.msra.mxu0 %v837
        %1456 = vmatpush.bf16.msra.mxu0 %v835
        %1457 = vmatpush.bf16.msra.mxu0 %v833
        %1458 = vmatpush.bf16.msra.mxu0 %v831
        %1459 = vmatpush.bf16.msra.mxu0 %v829
        %1460 = vmatpush.bf16.msra.mxu0 %v827
        %1461 = vmatpush.bf16.msra.mxu0 %v825
        %1462 = vmatmul.bf16.gmra.mxu0 %v468
        %v1463 = vpop.f32.mrf.mxu0
        %v1464 = vadd.f32 %v1375, %v1463
        %v1465 = vpop.f32.mrf.mxu0
        %v1466 = vadd.f32 %v1377, %v1465
        %1467 = vmatmul.bf16.gmra.mxu0 %v472
        %v1468 = vpop.f32.mrf.mxu0
        %v1469 = vadd.f32 %v1380, %v1468
        %v1470 = vpop.f32.mrf.mxu0
        %v1471 = vadd.f32 %v1382, %v1470
        %1472 = vmatmul.bf16.gmra.mxu0 %v476
        %v1473 = vpop.f32.mrf.mxu0
        %v1474 = vadd.f32 %v1385, %v1473
        %v1475 = vpop.f32.mrf.mxu0
        %v1476 = vadd.f32 %v1387, %v1475
        %1477 = vmatmul.bf16.gmra.mxu0 %v480
        %v1478 = vpop.f32.mrf.mxu0
        %v1479 = vadd.f32 %v1390, %v1478
        %v1480 = vpop.f32.mrf.mxu0
        %v1481 = vadd.f32 %v1392, %v1480
        %1482 = vmatmul.bf16.gmra.mxu0 %v484
        %v1483 = vpop.f32.mrf.mxu0
        %v1484 = vadd.f32 %v1395, %v1483
        %v1485 = vpop.f32.mrf.mxu0
        %v1486 = vadd.f32 %v1397, %v1485
        %1487 = vmatmul.bf16.gmra.mxu0 %v488
        %v1488 = vpop.f32.mrf.mxu0
        %v1489 = vadd.f32 %v1400, %v1488
        %v1490 = vpop.f32.mrf.mxu0
        %v1491 = vadd.f32 %v1402, %v1490
        %1492 = vmatmul.bf16.gmra.mxu0 %v492
        %v1493 = vpop.f32.mrf.mxu0
        %v1494 = vadd.f32 %v1405, %v1493
        %v1495 = vpop.f32.mrf.mxu0
        %v1496 = vadd.f32 %v1407, %v1495
        %1497 = vmatmul.bf16.gmra.mxu0 %v496
        %v1498 = vpop.f32.mrf.mxu0
        %v1499 = vadd.f32 %v1410, %v1498
        %v1500 = vpop.f32.mrf.mxu0
        %v1501 = vadd.f32 %v1412, %v1500
        %1502 = vmatmul.bf16.gmra.mxu0 %v500
        %v1503 = vpop.f32.mrf.mxu0
        %v1504 = vadd.f32 %v1415, %v1503
        %v1505 = vpop.f32.mrf.mxu0
        %v1506 = vadd.f32 %v1417, %v1505
        %1507 = vmatmul.bf16.gmra.mxu0 %v504
        %v1508 = vpop.f32.mrf.mxu0
        %v1509 = vadd.f32 %v1420, %v1508
        %v1510 = vpop.f32.mrf.mxu0
        %v1511 = vadd.f32 %v1422, %v1510
        %1512 = vmatmul.bf16.gmra.mxu0 %v508
        %v1513 = vpop.f32.mrf.mxu0
        %v1514 = vadd.f32 %v1425, %v1513
        %v1515 = vpop.f32.mrf.mxu0
        %v1516 = vadd.f32 %v1427, %v1515
        %1517 = vmatmul.bf16.gmra.mxu0 %v512
        %v1518 = vpop.f32.mrf.mxu0
        %v1519 = vadd.f32 %v1430, %v1518
        %v1520 = vpop.f32.mrf.mxu0
        %v1521 = vadd.f32 %v1432, %v1520
        %1522 = vmatmul.bf16.gmra.mxu0 %v516
        %v1523 = vpop.f32.mrf.mxu0
        %v1524 = vadd.f32 %v1435, %v1523
        %v1525 = vpop.f32.mrf.mxu0
        %v1526 = vadd.f32 %v1437, %v1525
        %1527 = vmatmul.bf16.gmra.mxu0 %v520
        %v1528 = vpop.f32.mrf.mxu0
        %v1529 = vadd.f32 %v1440, %v1528
        %v1530 = vpop.f32.mrf.mxu0
        %v1531 = vadd.f32 %v1442, %v1530
        %1532 = vmatmul.bf16.gmra.mxu0 %v524
        %v1533 = vpop.f32.mrf.mxu0
        %v1534 = vadd.f32 %v1445, %v1533
        %v1535 = vpop.f32.mrf.mxu0
        %v1536 = vadd.f32 %v1447, %v1535
        %1537 = vmatmul.bf16.gmra.mxu0 %v528
        %v1538 = vpop.f32.mrf.mxu0
        %v1539 = vadd.f32 %v1450, %v1538
        %v1540 = vpop.f32.mrf.mxu0
        %v1541 = vadd.f32 %v1452, %v1540
        %1542 = vdwg.mxu0
        %1543 = vmatpush.bf16.msra.mxu0 %v855
        %1544 = vmatpush.bf16.msra.mxu0 %v853
        %1545 = vmatpush.bf16.msra.mxu0 %v851
        %1546 = vmatpush.bf16.msra.mxu0 %v849
        %1547 = vmatpush.bf16.msra.mxu0 %v847
        %1548 = vmatpush.bf16.msra.mxu0 %v845
        %1549 = vmatpush.bf16.msra.mxu0 %v843
        %1550 = vmatpush.bf16.msra.mxu0 %v841
        %1551 = vmatmul.bf16.gmra.mxu0 %v469
        %v1552 = vpop.f32.mrf.mxu0
        %v1553 = vadd.f32 %v1464, %v1552
        %v1554 = vpop.f32.mrf.mxu0
        %v1555 = vadd.f32 %v1466, %v1554
        %1556 = vmatmul.bf16.gmra.mxu0 %v473
        %v1557 = vpop.f32.mrf.mxu0
        %v1558 = vadd.f32 %v1469, %v1557
        %v1559 = vpop.f32.mrf.mxu0
        %v1560 = vadd.f32 %v1471, %v1559
        %1561 = vmatmul.bf16.gmra.mxu0 %v477
        %v1562 = vpop.f32.mrf.mxu0
        %v1563 = vadd.f32 %v1474, %v1562
        %v1564 = vpop.f32.mrf.mxu0
        %v1565 = vadd.f32 %v1476, %v1564
        %1566 = vmatmul.bf16.gmra.mxu0 %v481
        %v1567 = vpop.f32.mrf.mxu0
        %v1568 = vadd.f32 %v1479, %v1567
        %v1569 = vpop.f32.mrf.mxu0
        %v1570 = vadd.f32 %v1481, %v1569
        %1571 = vmatmul.bf16.gmra.mxu0 %v485
        %v1572 = vpop.f32.mrf.mxu0
        %v1573 = vadd.f32 %v1484, %v1572
        %v1574 = vpop.f32.mrf.mxu0
        %v1575 = vadd.f32 %v1486, %v1574
        %1576 = vmatmul.bf16.gmra.mxu0 %v489
        %v1577 = vpop.f32.mrf.mxu0
        %v1578 = vadd.f32 %v1489, %v1577
        %v1579 = vpop.f32.mrf.mxu0
        %v1580 = vadd.f32 %v1491, %v1579
        %1581 = vmatmul.bf16.gmra.mxu0 %v493
        %v1582 = vpop.f32.mrf.mxu0
        %v1583 = vadd.f32 %v1494, %v1582
        %v1584 = vpop.f32.mrf.mxu0
        %v1585 = vadd.f32 %v1496, %v1584
        %1586 = vmatmul.bf16.gmra.mxu0 %v497
        %v1587 = vpop.f32.mrf.mxu0
        %v1588 = vadd.f32 %v1499, %v1587
        %v1589 = vpop.f32.mrf.mxu0
        %v1590 = vadd.f32 %v1501, %v1589
        %1591 = vmatmul.bf16.gmra.mxu0 %v501
        %v1592 = vpop.f32.mrf.mxu0
        %v1593 = vadd.f32 %v1504, %v1592
        %v1594 = vpop.f32.mrf.mxu0
        %v1595 = vadd.f32 %v1506, %v1594
        %1596 = vmatmul.bf16.gmra.mxu0 %v505
        %v1597 = vpop.f32.mrf.mxu0
        %v1598 = vadd.f32 %v1509, %v1597
        %v1599 = vpop.f32.mrf.mxu0
        %v1600 = vadd.f32 %v1511, %v1599
        %1601 = vmatmul.bf16.gmra.mxu0 %v509
        %v1602 = vpop.f32.mrf.mxu0
        %v1603 = vadd.f32 %v1514, %v1602
        %v1604 = vpop.f32.mrf.mxu0
        %v1605 = vadd.f32 %v1516, %v1604
        %1606 = vmatmul.bf16.gmra.mxu0 %v513
        %v1607 = vpop.f32.mrf.mxu0
        %v1608 = vadd.f32 %v1519, %v1607
        %v1609 = vpop.f32.mrf.mxu0
        %v1610 = vadd.f32 %v1521, %v1609
        %1611 = vmatmul.bf16.gmra.mxu0 %v517
        %v1612 = vpop.f32.mrf.mxu0
        %v1613 = vadd.f32 %v1524, %v1612
        %v1614 = vpop.f32.mrf.mxu0
        %v1615 = vadd.f32 %v1526, %v1614
        %1616 = vmatmul.bf16.gmra.mxu0 %v521
        %v1617 = vpop.f32.mrf.mxu0
        %v1618 = vadd.f32 %v1529, %v1617
        %v1619 = vpop.f32.mrf.mxu0
        %v1620 = vadd.f32 %v1531, %v1619
        %1621 = vmatmul.bf16.gmra.mxu0 %v525
        %v1622 = vpop.f32.mrf.mxu0
        %v1623 = vadd.f32 %v1534, %v1622
        %v1624 = vpop.f32.mrf.mxu0
        %v1625 = vadd.f32 %v1536, %v1624
        %1626 = vmatmul.bf16.gmra.mxu0 %v529
        %v1627 = vpop.f32.mrf.mxu0
        %v1628 = vadd.f32 %v1539, %v1627
        %v1629 = vpop.f32.mrf.mxu0
        %v1630 = vadd.f32 %v1541, %v1629
        %1631 = vdwg.mxu0
        %v1632 = vmax.f32 %v1197, 0.0
        %v1633 = vmax.f32 %v1553, 0.0
        %v1634 = vmax.f32 %v1199, 0.0
        %v1635 = vmax.f32 %v1555, 0.0
        %v1636 = vmax.f32 %v1202, 0.0
        %v1637 = vmax.f32 %v1558, 0.0
        %v1638 = vmax.f32 %v1204, 0.0
        %v1639 = vmax.f32 %v1560, 0.0
        %v1640 = vmax.f32 %v1207, 0.0
        %v1641 = vmax.f32 %v1563, 0.0
        %v1642 = vmax.f32 %v1209, 0.0
        %v1643 = vmax.f32 %v1565, 0.0
        %v1644 = vmax.f32 %v1212, 0.0
        %v1645 = vmax.f32 %v1568, 0.0
        %v1646 = vmax.f32 %v1214, 0.0
        %v1647 = vmax.f32 %v1570, 0.0
        %v1648 = vmax.f32 %v1217, 0.0
        %v1649 = vmax.f32 %v1573, 0.0
        %v1650 = vmax.f32 %v1219, 0.0
        %v1651 = vmax.f32 %v1575, 0.0
        %v1652 = vmax.f32 %v1222, 0.0
        %v1653 = vmax.f32 %v1578, 0.0
        %v1654 = vmax.f32 %v1224, 0.0
        %v1655 = vmax.f32 %v1580, 0.0
        %v1656 = vmax.f32 %v1227, 0.0
        %v1657 = vmax.f32 %v1583, 0.0
        %v1658 = vmax.f32 %v1229, 0.0
        %v1659 = vmax.f32 %v1585, 0.0
        %v1660 = vmax.f32 %v1232, 0.0
        %v1661 = vmax.f32 %v1588, 0.0
        %v1662 = vmax.f32 %v1234, 0.0
        %v1663 = vmax.f32 %v1590, 0.0
        %v1664 = vmax.f32 %v1237, 0.0
        %v1665 = vmax.f32 %v1593, 0.0
        %v1666 = vmax.f32 %v1239, 0.0
        %v1667 = vmax.f32 %v1595, 0.0
        %v1668 = vmax.f32 %v1242, 0.0
        %v1669 = vmax.f32 %v1598, 0.0
        %v1670 = vmax.f32 %v1244, 0.0
        %v1671 = vmax.f32 %v1600, 0.0
        %v1672 = vmax.f32 %v1247, 0.0
        %v1673 = vmax.f32 %v1603, 0.0
        %v1674 = vmax.f32 %v1249, 0.0
        %v1675 = vmax.f32 %v1605, 0.0
        %v1676 = vmax.f32 %v1252, 0.0
        %v1677 = vmax.f32 %v1608, 0.0
        %v1678 = vmax.f32 %v1254, 0.0
        %v1679 = vmax.f32 %v1610, 0.0
        %v1680 = vmax.f32 %v1257, 0.0
        %v1681 = vmax.f32 %v1613, 0.0
        %v1682 = vmax.f32 %v1259, 0.0
        %v1683 = vmax.f32 %v1615, 0.0
        %v1684 = vmax.f32 %v1262, 0.0
        %v1685 = vmax.f32 %v1618, 0.0
        %v1686 = vmax.f32 %v1264, 0.0
        %v1687 = vmax.f32 %v1620, 0.0
        %v1688 = vmax.f32 %v1267, 0.0
        %v1689 = vmax.f32 %v1623, 0.0
        %v1690 = vmax.f32 %v1269, 0.0
        %v1691 = vmax.f32 %v1625, 0.0
        %v1692 = vmax.f32 %v1272, 0.0
        %v1693 = vmax.f32 %v1628, 0.0
        %v1694 = vmax.f32 %v1274, 0.0
        %v1695 = vmax.f32 %v1630, 0.0
        %v1696 = vpack.c.bf16 %v1634, %v1632
        %v1697 = vpack.c.bf16 %v1635, %v1633
        %v1698 = vpack.c.bf16 %v1638, %v1636
        %v1699 = vpack.c.bf16 %v1639, %v1637
        %v1700 = vpack.c.bf16 %v1642, %v1640
        %v1701 = vpack.c.bf16 %v1643, %v1641
        %v1702 = vpack.c.bf16 %v1646, %v1644
        %v1703 = vpack.c.bf16 %v1647, %v1645
        %v1704 = vpack.c.bf16 %v1650, %v1648
        %v1705 = vpack.c.bf16 %v1651, %v1649
        %v1706 = vpack.c.bf16 %v1654, %v1652
        %v1707 = vpack.c.bf16 %v1655, %v1653
        %v1708 = vpack.c.bf16 %v1658, %v1656
        %v1709 = vpack.c.bf16 %v1659, %v1657
        %v1710 = vpack.c.bf16 %v1662, %v1660
        %v1711 = vpack.c.bf16 %v1663, %v1661
        %v1712 = vpack.c.bf16 %v1666, %v1664
        %v1713 = vpack.c.bf16 %v1667, %v1665
        %v1714 = vpack.c.bf16 %v1670, %v1668
        %v1715 = vpack.c.bf16 %v1671, %v1669
        %v1716 = vpack.c.bf16 %v1674, %v1672
        %v1717 = vpack.c.bf16 %v1675, %v1673
        %v1718 = vpack.c.bf16 %v1678, %v1676
        %v1719 = vpack.c.bf16 %v1679, %v1677
        %v1720 = vpack.c.bf16 %v1682, %v1680
        %v1721 = vpack.c.bf16 %v1683, %v1681
        %v1722 = vpack.c.bf16 %v1686, %v1684
        %v1723 = vpack.c.bf16 %v1687, %v1685
        %v1724 = vpack.c.bf16 %v1690, %v1688
        %v1725 = vpack.c.bf16 %v1691, %v1689
        %v1726 = vpack.c.bf16 %v1694, %v1692
        %v1727 = vpack.c.bf16 %v1695, %v1693
        %v1728 = vld [vmem:[#allocation7] sm:$0xf]
        %v1729 = vld [vmem:[#allocation7 + $0x4] sm:$0xf]
        %v1730 = vld [vmem:[#allocation7 + $0x8] sm:$0xf]
        %v1731 = vld [vmem:[#allocation7 + $0xc] sm:$0xf]
        %v1732 = vld [vmem:[#allocation7 + $0x10] sm:$0xf]
        %v1733 = vld [vmem:[#allocation7 + $0x14] sm:$0xf]
        %v1734 = vld [vmem:[#allocation7 + $0x18] sm:$0xf]
        %v1735 = vld [vmem:[#allocation7 + $0x1c] sm:$0xf]
        %v1736 = vld [vmem:[#allocation7 + $0x20] sm:$0xf]
        %v1737 = vld [vmem:[#allocation7 + $0x24] sm:$0xf]
        %v1738 = vld [vmem:[#allocation7 + $0x28] sm:$0xf]
        %v1739 = vld [vmem:[#allocation7 + $0x2c] sm:$0xf]
        %v1740 = vld [vmem:[#allocation7 + $0x30] sm:$0xf]
        %v1741 = vld [vmem:[#allocation7 + $0x34] sm:$0xf]
        %v1742 = vld [vmem:[#allocation7 + $0x38] sm:$0xf]
        %v1743 = vld [vmem:[#allocation7 + $0x3c] sm:$0xf]
        %v1744 = vld [vmem:[#allocation7 + $0x40] sm:$0xf]
        %v1745 = vld [vmem:[#allocation7 + $0x44] sm:$0xf]
        %v1746 = vld [vmem:[#allocation7 + $0x48] sm:$0xf]
        %v1747 = vld [vmem:[#allocation7 + $0x4c] sm:$0xf]
        %v1748 = vld [vmem:[#allocation7 + $0x50] sm:$0xf]
        %v1749 = vld [vmem:[#allocation7 + $0x54] sm:$0xf]
        %v1750 = vld [vmem:[#allocation7 + $0x58] sm:$0xf]
        %v1751 = vld [vmem:[#allocation7 + $0x5c] sm:$0xf]
        %v1752 = vld [vmem:[#allocation7 + $0x60] sm:$0xf]
        %v1753 = vld [vmem:[#allocation7 + $0x64] sm:$0xf]
        %v1754 = vld [vmem:[#allocation7 + $0x68] sm:$0xf]
        %v1755 = vld [vmem:[#allocation7 + $0x6c] sm:$0xf]
        %v1756 = vld [vmem:[#allocation7 + $0x70] sm:$0xf]
        %v1757 = vld [vmem:[#allocation7 + $0x74] sm:$0xf]
        %v1758 = vld [vmem:[#allocation7 + $0x78] sm:$0xf]
        %v1759 = vld [vmem:[#allocation7 + $0x7c] sm:$0xf]
        %v1760 = vld [vmem:[%s4] sm:$0x1]
        %v1762 = vperm.slane %v1760, 0
        %v1796 = vunpack.c.l.b16 %v1728
        %v1797 = vunpack.c.l.b16 %v1729
        %v1798 = vunpack.c.l.b16 %v1730
        %v1799 = vunpack.c.l.b16 %v1731
        %v1800 = vunpack.c.l.b16 %v1732
        %v1801 = vunpack.c.l.b16 %v1733
        %v1802 = vunpack.c.l.b16 %v1734
        %v1803 = vunpack.c.l.b16 %v1735
        %v1804 = vunpack.c.l.b16 %v1736
        %v1805 = vunpack.c.l.b16 %v1737
        %v1806 = vunpack.c.l.b16 %v1738
        %v1807 = vunpack.c.l.b16 %v1739
        %v1808 = vunpack.c.l.b16 %v1740
        %v1809 = vunpack.c.l.b16 %v1741
        %v1810 = vunpack.c.l.b16 %v1742
        %v1811 = vunpack.c.l.b16 %v1743
        %v1812 = vunpack.c.l.b16 %v1744
        %v1813 = vunpack.c.l.b16 %v1745
        %v1814 = vunpack.c.l.b16 %v1746
        %v1815 = vunpack.c.l.b16 %v1747
        %v1816 = vunpack.c.l.b16 %v1748
        %v1817 = vunpack.c.l.b16 %v1749
        %v1818 = vunpack.c.l.b16 %v1750
        %v1819 = vunpack.c.l.b16 %v1751
        %v1820 = vunpack.c.l.b16 %v1752
        %v1821 = vunpack.c.l.b16 %v1753
        %v1822 = vunpack.c.l.b16 %v1754
        %v1823 = vunpack.c.l.b16 %v1755
        %v1824 = vunpack.c.l.b16 %v1756
        %v1825 = vunpack.c.l.b16 %v1757
        %v1826 = vunpack.c.l.b16 %v1758
        %v1827 = vunpack.c.l.b16 %v1759
        %v1828 = vpack.c.b16 %v1797, %v1796
        %v1829 = vpack.c.b16 %v1799, %v1798
        %v1830 = vpack.c.b16 %v1801, %v1800
        %v1831 = vpack.c.b16 %v1803, %v1802
        %v1832 = vpack.c.b16 %v1805, %v1804
        %v1833 = vpack.c.b16 %v1807, %v1806
        %v1834 = vpack.c.b16 %v1809, %v1808
        %v1835 = vpack.c.b16 %v1811, %v1810
        %v1836 = vpack.c.b16 %v1813, %v1812
        %v1837 = vpack.c.b16 %v1815, %v1814
        %v1838 = vpack.c.b16 %v1817, %v1816
        %v1839 = vpack.c.b16 %v1819, %v1818
        %v1840 = vpack.c.b16 %v1821, %v1820
        %v1841 = vpack.c.b16 %v1823, %v1822
        %v1842 = vpack.c.b16 %v1825, %v1824
        %v1843 = vpack.c.b16 %v1827, %v1826
        %1860 = vmatpush.bf16.msra.mxu0 %v1835
        %1861 = vmatpush.bf16.msra.mxu0 %v1834
        %1862 = vmatpush.bf16.msra.mxu0 %v1833
        %1863 = vmatpush.bf16.msra.mxu0 %v1832
        %1864 = vmatpush.bf16.msra.mxu0 %v1831
        %1865 = vmatpush.bf16.msra.mxu0 %v1830
        %1866 = vmatpush.bf16.msra.mxu0 %v1829
        %1867 = vmatpush.bf16.msra.mxu0 %v1828
        %1868 = vmatmul.bf16.gmra.mxu0 %v1696
        %v1869 = vpop.f32.mrf.mxu0
        %v1870 = vadd.f32 %v1762, %v1869
        %v1871 = vpop.f32.mrf.mxu0
        %v1872 = vadd.f32 %v1762, %v1871
        %1873 = vmatmul.bf16.gmra.mxu0 %v1698
        %v1874 = vpop.f32.mrf.mxu0
        %v1875 = vadd.f32 %v1762, %v1874
        %v1876 = vpop.f32.mrf.mxu0
        %v1877 = vadd.f32 %v1762, %v1876
        %1878 = vmatmul.bf16.gmra.mxu0 %v1700
        %v1879 = vpop.f32.mrf.mxu0
        %v1880 = vadd.f32 %v1762, %v1879
        %v1881 = vpop.f32.mrf.mxu0
        %v1882 = vadd.f32 %v1762, %v1881
        %1883 = vmatmul.bf16.gmra.mxu0 %v1702
        %v1884 = vpop.f32.mrf.mxu0
        %v1885 = vadd.f32 %v1762, %v1884
        %v1886 = vpop.f32.mrf.mxu0
        %v1887 = vadd.f32 %v1762, %v1886
        %1888 = vmatmul.bf16.gmra.mxu0 %v1704
        %v1889 = vpop.f32.mrf.mxu0
        %v1890 = vadd.f32 %v1762, %v1889
        %v1891 = vpop.f32.mrf.mxu0
        %v1892 = vadd.f32 %v1762, %v1891
        %1893 = vmatmul.bf16.gmra.mxu0 %v1706
        %v1894 = vpop.f32.mrf.mxu0
        %v1895 = vadd.f32 %v1762, %v1894
        %v1896 = vpop.f32.mrf.mxu0
        %v1897 = vadd.f32 %v1762, %v1896
        %1898 = vmatmul.bf16.gmra.mxu0 %v1708
        %v1899 = vpop.f32.mrf.mxu0
        %v1900 = vadd.f32 %v1762, %v1899
        %v1901 = vpop.f32.mrf.mxu0
        %v1902 = vadd.f32 %v1762, %v1901
        %1903 = vmatmul.bf16.gmra.mxu0 %v1710
        %v1904 = vpop.f32.mrf.mxu0
        %v1905 = vadd.f32 %v1762, %v1904
        %v1906 = vpop.f32.mrf.mxu0
        %v1907 = vadd.f32 %v1762, %v1906
        %1908 = vmatmul.bf16.gmra.mxu0 %v1712
        %v1909 = vpop.f32.mrf.mxu0
        %v1910 = vadd.f32 %v1762, %v1909
        %v1911 = vpop.f32.mrf.mxu0
        %v1912 = vadd.f32 %v1762, %v1911
        %1913 = vmatmul.bf16.gmra.mxu0 %v1714
        %v1914 = vpop.f32.mrf.mxu0
        %v1915 = vadd.f32 %v1762, %v1914
        %v1916 = vpop.f32.mrf.mxu0
        %v1917 = vadd.f32 %v1762, %v1916
        %1918 = vmatmul.bf16.gmra.mxu0 %v1716
        %v1919 = vpop.f32.mrf.mxu0
        %v1920 = vadd.f32 %v1762, %v1919
        %v1921 = vpop.f32.mrf.mxu0
        %v1922 = vadd.f32 %v1762, %v1921
        %1923 = vmatmul.bf16.gmra.mxu0 %v1718
        %v1924 = vpop.f32.mrf.mxu0
        %v1925 = vadd.f32 %v1762, %v1924
        %v1926 = vpop.f32.mrf.mxu0
        %v1927 = vadd.f32 %v1762, %v1926
        %1928 = vmatmul.bf16.gmra.mxu0 %v1720
        %v1929 = vpop.f32.mrf.mxu0
        %v1930 = vadd.f32 %v1762, %v1929
        %v1931 = vpop.f32.mrf.mxu0
        %v1932 = vadd.f32 %v1762, %v1931
        %1933 = vmatmul.bf16.gmra.mxu0 %v1722
        %v1934 = vpop.f32.mrf.mxu0
        %v1935 = vadd.f32 %v1762, %v1934
        %v1936 = vpop.f32.mrf.mxu0
        %v1937 = vadd.f32 %v1762, %v1936
        %1938 = vmatmul.bf16.gmra.mxu0 %v1724
        %v1939 = vpop.f32.mrf.mxu0
        %v1940 = vadd.f32 %v1762, %v1939
        %v1941 = vpop.f32.mrf.mxu0
        %v1942 = vadd.f32 %v1762, %v1941
        %1943 = vmatmul.bf16.gmra.mxu0 %v1726
        %v1944 = vpop.f32.mrf.mxu0
        %v1945 = vadd.f32 %v1762, %v1944
        %v1946 = vpop.f32.mrf.mxu0
        %v1947 = vadd.f32 %v1762, %v1946
        %1948 = vdwg.mxu0
        %1949 = vmatpush.bf16.msra.mxu0 %v1843
        %1950 = vmatpush.bf16.msra.mxu0 %v1842
        %1951 = vmatpush.bf16.msra.mxu0 %v1841
        %1952 = vmatpush.bf16.msra.mxu0 %v1840
        %1953 = vmatpush.bf16.msra.mxu0 %v1839
        %1954 = vmatpush.bf16.msra.mxu0 %v1838
        %1955 = vmatpush.bf16.msra.mxu0 %v1837
        %1956 = vmatpush.bf16.msra.mxu0 %v1836
        %1957 = vmatmul.bf16.gmra.mxu0 %v1697
        %v1958 = vpop.f32.mrf.mxu0
        %v1959 = vadd.f32 %v1870, %v1958
        %v1960 = vpop.f32.mrf.mxu0
        %v1961 = vadd.f32 %v1872, %v1960
        %1962 = vmatmul.bf16.gmra.mxu0 %v1699
        %v1963 = vpop.f32.mrf.mxu0
        %v1964 = vadd.f32 %v1875, %v1963
        %v1965 = vpop.f32.mrf.mxu0
        %v1966 = vadd.f32 %v1877, %v1965
        %1967 = vmatmul.bf16.gmra.mxu0 %v1701
        %v1968 = vpop.f32.mrf.mxu0
        %v1969 = vadd.f32 %v1880, %v1968
        %v1970 = vpop.f32.mrf.mxu0
        %v1971 = vadd.f32 %v1882, %v1970
        %1972 = vmatmul.bf16.gmra.mxu0 %v1703
        %v1973 = vpop.f32.mrf.mxu0
        %v1974 = vadd.f32 %v1885, %v1973
        %v1975 = vpop.f32.mrf.mxu0
        %v1976 = vadd.f32 %v1887, %v1975
        %1977 = vmatmul.bf16.gmra.mxu0 %v1705
        %v1978 = vpop.f32.mrf.mxu0
        %v1979 = vadd.f32 %v1890, %v1978
        %v1980 = vpop.f32.mrf.mxu0
        %v1981 = vadd.f32 %v1892, %v1980
        %1982 = vmatmul.bf16.gmra.mxu0 %v1707
        %v1983 = vpop.f32.mrf.mxu0
        %v1984 = vadd.f32 %v1895, %v1983
        %v1985 = vpop.f32.mrf.mxu0
        %v1986 = vadd.f32 %v1897, %v1985
        %1987 = vmatmul.bf16.gmra.mxu0 %v1709
        %v1988 = vpop.f32.mrf.mxu0
        %v1989 = vadd.f32 %v1900, %v1988
        %v1990 = vpop.f32.mrf.mxu0
        %v1991 = vadd.f32 %v1902, %v1990
        %1992 = vmatmul.bf16.gmra.mxu0 %v1711
        %v1993 = vpop.f32.mrf.mxu0
        %v1994 = vadd.f32 %v1905, %v1993
        %v1995 = vpop.f32.mrf.mxu0
        %v1996 = vadd.f32 %v1907, %v1995
        %1997 = vmatmul.bf16.gmra.mxu0 %v1713
        %v1998 = vpop.f32.mrf.mxu0
        %v1999 = vadd.f32 %v1910, %v1998
        %v2000 = vpop.f32.mrf.mxu0
        %v2001 = vadd.f32 %v1912, %v2000
        %2002 = vmatmul.bf16.gmra.mxu0 %v1715
        %v2003 = vpop.f32.mrf.mxu0
        %v2004 = vadd.f32 %v1915, %v2003
        %v2005 = vpop.f32.mrf.mxu0
        %v2006 = vadd.f32 %v1917, %v2005
        %2007 = vmatmul.bf16.gmra.mxu0 %v1717
        %v2008 = vpop.f32.mrf.mxu0
        %v2009 = vadd.f32 %v1920, %v2008
        %v2010 = vpop.f32.mrf.mxu0
        %v2011 = vadd.f32 %v1922, %v2010
        %2012 = vmatmul.bf16.gmra.mxu0 %v1719
        %v2013 = vpop.f32.mrf.mxu0
        %v2014 = vadd.f32 %v1925, %v2013
        %v2015 = vpop.f32.mrf.mxu0
        %v2016 = vadd.f32 %v1927, %v2015
        %2017 = vmatmul.bf16.gmra.mxu0 %v1721
        %v2018 = vpop.f32.mrf.mxu0
        %v2019 = vadd.f32 %v1930, %v2018
        %v2020 = vpop.f32.mrf.mxu0
        %v2021 = vadd.f32 %v1932, %v2020
        %2022 = vmatmul.bf16.gmra.mxu0 %v1723
        %v2023 = vpop.f32.mrf.mxu0
        %v2024 = vadd.f32 %v1935, %v2023
        %v2025 = vpop.f32.mrf.mxu0
        %v2026 = vadd.f32 %v1937, %v2025
        %2027 = vmatmul.bf16.gmra.mxu0 %v1725
        %v2028 = vpop.f32.mrf.mxu0
        %v2029 = vadd.f32 %v1940, %v2028
        %v2030 = vpop.f32.mrf.mxu0
        %v2031 = vadd.f32 %v1942, %v2030
        %2032 = vmatmul.bf16.gmra.mxu0 %v1727
        %v2033 = vpop.f32.mrf.mxu0
        %v2034 = vadd.f32 %v1945, %v2033
        %v2035 = vpop.f32.mrf.mxu0
        %v2036 = vadd.f32 %v1947, %v2035
        %2037 = vdwg.mxu0
        %v2038 = vmax.f32 %v1959, 0.0
        %v2039 = vmax.f32 %v1961, 0.0
        %v2040 = vmax.f32 %v1964, 0.0
        %v2041 = vmax.f32 %v1966, 0.0
        %v2042 = vmax.f32 %v1969, 0.0
        %v2043 = vmax.f32 %v1971, 0.0
        %v2044 = vmax.f32 %v1974, 0.0
        %v2045 = vmax.f32 %v1976, 0.0
        %v2046 = vmax.f32 %v1979, 0.0
        %v2047 = vmax.f32 %v1981, 0.0
        %v2048 = vmax.f32 %v1984, 0.0
        %v2049 = vmax.f32 %v1986, 0.0
        %v2050 = vmax.f32 %v1989, 0.0
        %v2051 = vmax.f32 %v1991, 0.0
        %v2052 = vmax.f32 %v1994, 0.0
        %v2053 = vmax.f32 %v1996, 0.0
        %v2054 = vmax.f32 %v1999, 0.0
        %v2055 = vmax.f32 %v2001, 0.0
        %v2056 = vmax.f32 %v2004, 0.0
        %v2057 = vmax.f32 %v2006, 0.0
        %v2058 = vmax.f32 %v2009, 0.0
        %v2059 = vmax.f32 %v2011, 0.0
        %v2060 = vmax.f32 %v2014, 0.0
        %v2061 = vmax.f32 %v2016, 0.0
        %v2062 = vmax.f32 %v2019, 0.0
        %v2063 = vmax.f32 %v2021, 0.0
        %v2064 = vmax.f32 %v2024, 0.0
        %v2065 = vmax.f32 %v2026, 0.0
        %v2066 = vmax.f32 %v2029, 0.0
        %v2067 = vmax.f32 %v2031, 0.0
        %v2068 = vmax.f32 %v2034, 0.0
        %v2069 = vmax.f32 %v2036, 0.0
        %v2070 = vld [vmem:[%s5] sm:$0x1]
        %v2072 = vperm.slane %v2070, 0
        %v2074 = vmul.f32 %v2038, %v2072
        %v2075 = vmul.f32 %v2039, %v2072
        %v2076 = vmul.f32 %v2040, %v2072
        %v2077 = vmul.f32 %v2041, %v2072
        %v2078 = vmul.f32 %v2042, %v2072
        %v2079 = vmul.f32 %v2043, %v2072
        %v2080 = vmul.f32 %v2044, %v2072
        %v2081 = vmul.f32 %v2045, %v2072
        %v2082 = vmul.f32 %v2046, %v2072
        %v2083 = vmul.f32 %v2047, %v2072
        %v2084 = vmul.f32 %v2048, %v2072
        %v2085 = vmul.f32 %v2049, %v2072
        %v2086 = vmul.f32 %v2050, %v2072
        %v2087 = vmul.f32 %v2051, %v2072
        %v2088 = vmul.f32 %v2052, %v2072
        %v2089 = vmul.f32 %v2053, %v2072
        %v2090 = vmul.f32 %v2054, %v2072
        %v2091 = vmul.f32 %v2055, %v2072
        %v2092 = vmul.f32 %v2056, %v2072
        %v2093 = vmul.f32 %v2057, %v2072
        %v2094 = vmul.f32 %v2058, %v2072
        %v2095 = vmul.f32 %v2059, %v2072
        %v2096 = vmul.f32 %v2060, %v2072
        %v2097 = vmul.f32 %v2061, %v2072
        %v2098 = vmul.f32 %v2062, %v2072
        %v2099 = vmul.f32 %v2063, %v2072
        %v2100 = vmul.f32 %v2064, %v2072
        %v2101 = vmul.f32 %v2065, %v2072
        %v2102 = vmul.f32 %v2066, %v2072
        %v2103 = vmul.f32 %v2067, %v2072
        %v2104 = vmul.f32 %v2068, %v2072
        %v2105 = vmul.f32 %v2069, %v2072
        %2106 = vadd.xlane.f32.xlu0 %v2074
        %v2107 = vpop.xlane.xlu0 %2106
        %2108 = vadd.xlane.f32.xlu0 %v2075
        %v2109 = vpop.xlane.xlu0 %2108
        %2110 = vadd.xlane.f32.xlu0 %v2076
        %v2111 = vpop.xlane.xlu0 %2110
        %2112 = vadd.xlane.f32.xlu0 %v2077
        %v2113 = vpop.xlane.xlu0 %2112
        %2114 = vadd.xlane.f32.xlu0 %v2078
        %v2115 = vpop.xlane.xlu0 %2114
        %2116 = vadd.xlane.f32.xlu0 %v2079
        %v2117 = vpop.xlane.xlu0 %2116
        %2118 = vadd.xlane.f32.xlu0 %v2080
        %v2119 = vpop.xlane.xlu0 %2118
        %2120 = vadd.xlane.f32.xlu0 %v2081
        %v2121 = vpop.xlane.xlu0 %2120
        %2122 = vadd.xlane.f32.xlu0 %v2082
        %v2123 = vpop.xlane.xlu0 %2122
        %2124 = vadd.xlane.f32.xlu0 %v2083
        %v2125 = vpop.xlane.xlu0 %2124
        %2126 = vadd.xlane.f32.xlu0 %v2084
        %v2127 = vpop.xlane.xlu0 %2126
        %2128 = vadd.xlane.f32.xlu0 %v2085
        %v2129 = vpop.xlane.xlu0 %2128
        %2130 = vadd.xlane.f32.xlu0 %v2086
        %v2131 = vpop.xlane.xlu0 %2130
        %2132 = vadd.xlane.f32.xlu0 %v2087
        %v2133 = vpop.xlane.xlu0 %2132
        %2134 = vadd.xlane.f32.xlu0 %v2088
        %v2135 = vpop.xlane.xlu0 %2134
        %2136 = vadd.xlane.f32.xlu0 %v2089
        %v2137 = vpop.xlane.xlu0 %2136
        %2138 = vadd.xlane.f32.xlu0 %v2090
        %v2139 = vpop.xlane.xlu0 %2138
        %2140 = vadd.xlane.f32.xlu0 %v2091
        %v2141 = vpop.xlane.xlu0 %2140
        %2142 = vadd.xlane.f32.xlu0 %v2092
        %v2143 = vpop.xlane.xlu0 %2142
        %2144 = vadd.xlane.f32.xlu0 %v2093
        %v2145 = vpop.xlane.xlu0 %2144
        %2146 = vadd.xlane.f32.xlu0 %v2094
        %v2147 = vpop.xlane.xlu0 %2146
        %2148 = vadd.xlane.f32.xlu0 %v2095
        %v2149 = vpop.xlane.xlu0 %2148
        %2150 = vadd.xlane.f32.xlu0 %v2096
        %v2151 = vpop.xlane.xlu0 %2150
        %2152 = vadd.xlane.f32.xlu0 %v2097
        %v2153 = vpop.xlane.xlu0 %2152
        %2154 = vadd.xlane.f32.xlu0 %v2098
        %v2155 = vpop.xlane.xlu0 %2154
        %2156 = vadd.xlane.f32.xlu0 %v2099
        %v2157 = vpop.xlane.xlu0 %2156
        %2158 = vadd.xlane.f32.xlu0 %v2100
        %v2159 = vpop.xlane.xlu0 %2158
        %2160 = vadd.xlane.f32.xlu0 %v2101
        %v2161 = vpop.xlane.xlu0 %2160
        %2162 = vadd.xlane.f32.xlu0 %v2102
        %v2163 = vpop.xlane.xlu0 %2162
        %2164 = vadd.xlane.f32.xlu0 %v2103
        %v2165 = vpop.xlane.xlu0 %2164
        %2166 = vadd.xlane.f32.xlu0 %v2104
        %v2167 = vpop.xlane.xlu0 %2166
        %2168 = vadd.xlane.f32.xlu0 %v2105
        %v2169 = vpop.xlane.xlu0 %2168
        %s2170 = sld [smem:[#allocation2]]
        %v2171 = vstv %s2170
        %v2172 = vadd.f32 %v2107, %v2171
        %v2173 = vadd.f32 %v2109, %v2171
        %v2174 = vadd.f32 %v2111, %v2171
        %v2175 = vadd.f32 %v2113, %v2171
        %v2176 = vadd.f32 %v2115, %v2171
        %v2177 = vadd.f32 %v2117, %v2171
        %v2178 = vadd.f32 %v2119, %v2171
        %v2179 = vadd.f32 %v2121, %v2171
        %v2180 = vadd.f32 %v2123, %v2171
        %v2181 = vadd.f32 %v2125, %v2171
        %v2182 = vadd.f32 %v2127, %v2171
        %v2183 = vadd.f32 %v2129, %v2171
        %v2184 = vadd.f32 %v2131, %v2171
        %v2185 = vadd.f32 %v2133, %v2171
        %v2186 = vadd.f32 %v2135, %v2171
        %v2187 = vadd.f32 %v2137, %v2171
        %v2188 = vadd.f32 %v2139, %v2171
        %v2189 = vadd.f32 %v2141, %v2171
        %v2190 = vadd.f32 %v2143, %v2171
        %v2191 = vadd.f32 %v2145, %v2171
        %v2192 = vadd.f32 %v2147, %v2171
        %v2193 = vadd.f32 %v2149, %v2171
        %v2194 = vadd.f32 %v2151, %v2171
        %v2195 = vadd.f32 %v2153, %v2171
        %v2196 = vadd.f32 %v2155, %v2171
        %v2197 = vadd.f32 %v2157, %v2171
        %v2198 = vadd.f32 %v2159, %v2171
        %v2199 = vadd.f32 %v2161, %v2171
        %v2200 = vadd.f32 %v2163, %v2171
        %v2201 = vadd.f32 %v2165, %v2171
        %v2202 = vadd.f32 %v2167, %v2171
        %v2203 = vadd.f32 %v2169, %v2171
        %v2204 = vxor.u32 %v2172, 2147483648
        %v2205 = vxor.u32 %v2173, 2147483648
        %v2206 = vxor.u32 %v2174, 2147483648
        %v2207 = vxor.u32 %v2175, 2147483648
        %v2208 = vxor.u32 %v2176, 2147483648
        %v2209 = vxor.u32 %v2177, 2147483648
        %v2210 = vxor.u32 %v2178, 2147483648
        %v2211 = vxor.u32 %v2179, 2147483648
        %v2212 = vxor.u32 %v2180, 2147483648
        %v2213 = vxor.u32 %v2181, 2147483648
        %v2214 = vxor.u32 %v2182, 2147483648
        %v2215 = vxor.u32 %v2183, 2147483648
        %v2216 = vxor.u32 %v2184, 2147483648
        %v2217 = vxor.u32 %v2185, 2147483648
        %v2218 = vxor.u32 %v2186, 2147483648
        %v2219 = vxor.u32 %v2187, 2147483648
        %v2220 = vxor.u32 %v2188, 2147483648
        %v2221 = vxor.u32 %v2189, 2147483648
        %v2222 = vxor.u32 %v2190, 2147483648
        %v2223 = vxor.u32 %v2191, 2147483648
        %v2224 = vxor.u32 %v2192, 2147483648
        %v2225 = vxor.u32 %v2193, 2147483648
        %v2226 = vxor.u32 %v2194, 2147483648
        %v2227 = vxor.u32 %v2195, 2147483648
        %v2228 = vxor.u32 %v2196, 2147483648
        %v2229 = vxor.u32 %v2197, 2147483648
        %v2230 = vxor.u32 %v2198, 2147483648
        %v2231 = vxor.u32 %v2199, 2147483648
        %v2232 = vxor.u32 %v2200, 2147483648
        %v2233 = vxor.u32 %v2201, 2147483648
        %v2234 = vxor.u32 %v2202, 2147483648
        %v2235 = vxor.u32 %v2203, 2147483648
        %v2236 = vmul.f32 %v2204, 1.442695
        %v2237 = vpow.pop %v2236
        %v2238 = vmul.f32 %v2205, 1.442695
        %v2239 = vpow.pop %v2238
        %v2240 = vmul.f32 %v2206, 1.442695
        %v2241 = vpow.pop %v2240
        %v2242 = vmul.f32 %v2207, 1.442695
        %v2243 = vpow.pop %v2242
        %v2244 = vmul.f32 %v2208, 1.442695
        %v2245 = vpow.pop %v2244
        %v2246 = vmul.f32 %v2209, 1.442695
        %v2247 = vpow.pop %v2246
        %v2248 = vmul.f32 %v2210, 1.442695
        %v2249 = vpow.pop %v2248
        %v2250 = vmul.f32 %v2211, 1.442695
        %v2251 = vpow.pop %v2250
        %v2252 = vmul.f32 %v2212, 1.442695
        %v2253 = vpow.pop %v2252
        %v2254 = vmul.f32 %v2213, 1.442695
        %v2255 = vpow.pop %v2254
        %v2256 = vmul.f32 %v2214, 1.442695
        %v2257 = vpow.pop %v2256
        %v2258 = vmul.f32 %v2215, 1.442695
        %v2259 = vpow.pop %v2258
        %v2260 = vmul.f32 %v2216, 1.442695
        %v2261 = vpow.pop %v2260
        %v2262 = vmul.f32 %v2217, 1.442695
        %v2263 = vpow.pop %v2262
        %v2264 = vmul.f32 %v2218, 1.442695
        %v2265 = vpow.pop %v2264
        %v2266 = vmul.f32 %v2219, 1.442695
        %v2267 = vpow.pop %v2266
        %v2268 = vmul.f32 %v2220, 1.442695
        %v2269 = vpow.pop %v2268
        %v2270 = vmul.f32 %v2221, 1.442695
        %v2271 = vpow.pop %v2270
        %v2272 = vmul.f32 %v2222, 1.442695
        %v2273 = vpow.pop %v2272
        %v2274 = vmul.f32 %v2223, 1.442695
        %v2275 = vpow.pop %v2274
        %v2276 = vmul.f32 %v2224, 1.442695
        %v2277 = vpow.pop %v2276
        %v2278 = vmul.f32 %v2225, 1.442695
        %v2279 = vpow.pop %v2278
        %v2280 = vmul.f32 %v2226, 1.442695
        %v2281 = vpow.pop %v2280
        %v2282 = vmul.f32 %v2227, 1.442695
        %v2283 = vpow.pop %v2282
        %v2284 = vmul.f32 %v2228, 1.442695
        %v2285 = vpow.pop %v2284
        %v2286 = vmul.f32 %v2229, 1.442695
        %v2287 = vpow.pop %v2286
        %v2288 = vmul.f32 %v2230, 1.442695
        %v2289 = vpow.pop %v2288
        %v2290 = vmul.f32 %v2231, 1.442695
        %v2291 = vpow.pop %v2290
        %v2292 = vmul.f32 %v2232, 1.442695
        %v2293 = vpow.pop %v2292
        %v2294 = vmul.f32 %v2233, 1.442695
        %v2295 = vpow.pop %v2294
        %v2296 = vmul.f32 %v2234, 1.442695
        %v2297 = vpow.pop %v2296
        %v2298 = vmul.f32 %v2235, 1.442695
        %v2299 = vpow.pop %v2298
        %v2300 = vadd.f32 %v2237, 1.0
        %v2301 = vadd.f32 %v2239, 1.0
        %v2302 = vadd.f32 %v2241, 1.0
        %v2303 = vadd.f32 %v2243, 1.0
        %v2304 = vadd.f32 %v2245, 1.0
        %v2305 = vadd.f32 %v2247, 1.0
        %v2306 = vadd.f32 %v2249, 1.0
        %v2307 = vadd.f32 %v2251, 1.0
        %v2308 = vadd.f32 %v2253, 1.0
        %v2309 = vadd.f32 %v2255, 1.0
        %v2310 = vadd.f32 %v2257, 1.0
        %v2311 = vadd.f32 %v2259, 1.0
        %v2312 = vadd.f32 %v2261, 1.0
        %v2313 = vadd.f32 %v2263, 1.0
        %v2314 = vadd.f32 %v2265, 1.0
        %v2315 = vadd.f32 %v2267, 1.0
        %v2316 = vadd.f32 %v2269, 1.0
        %v2317 = vadd.f32 %v2271, 1.0
        %v2318 = vadd.f32 %v2273, 1.0
        %v2319 = vadd.f32 %v2275, 1.0
        %v2320 = vadd.f32 %v2277, 1.0
        %v2321 = vadd.f32 %v2279, 1.0
        %v2322 = vadd.f32 %v2281, 1.0
        %v2323 = vadd.f32 %v2283, 1.0
        %v2324 = vadd.f32 %v2285, 1.0
        %v2325 = vadd.f32 %v2287, 1.0
        %v2326 = vadd.f32 %v2289, 1.0
        %v2327 = vadd.f32 %v2291, 1.0
        %v2328 = vadd.f32 %v2293, 1.0
        %v2329 = vadd.f32 %v2295, 1.0
        %v2330 = vadd.f32 %v2297, 1.0
        %v2331 = vadd.f32 %v2299, 1.0
        %v2332 = vrcp.pop %v2300
        %v2333 = vmul.f32 %v2300, %v2332
        %v2334 = vsub.f32 1.0, %v2333
        %v2335 = vmul.f32 %v2332, %v2334
        %v2336 = vadd.f32 %v2332, %v2335
        %vm2337 = vweird.f32 %v2300
        %vm2338 = vweird.f32 %v2332
        %vm2339 = vmor %vm2337, %vm2338
        %v2340 = vsel %vm2339, %v2332, %v2336
        %v2341 = vand.u32 2147483647, %v2300
        %vm2342 = vcmp.eq.f32.partialorder %v2341, 8.507059e+37
        %v2343 = vand.u32 %v2300, 2147483648
        %v2344 = vor.u32 1.1754944e-38, %v2343
        %v2345 = vsel %vm2342, %v2344, %v2340
        %v2346 = vmul.f32 1.0, %v2345
        %v2347 = vrcp.pop %v2301
        %v2348 = vmul.f32 %v2301, %v2347
        %v2349 = vsub.f32 1.0, %v2348
        %v2350 = vmul.f32 %v2347, %v2349
        %v2351 = vadd.f32 %v2347, %v2350
        %vm2352 = vweird.f32 %v2301
        %vm2353 = vweird.f32 %v2347
        %vm2354 = vmor %vm2352, %vm2353
        %v2355 = vsel %vm2354, %v2347, %v2351
        %v2356 = vand.u32 2147483647, %v2301
        %vm2357 = vcmp.eq.f32.partialorder %v2356, 8.507059e+37
        %v2358 = vand.u32 %v2301, 2147483648
        %v2359 = vor.u32 1.1754944e-38, %v2358
        %v2360 = vsel %vm2357, %v2359, %v2355
        %v2361 = vmul.f32 1.0, %v2360
        %v2362 = vrcp.pop %v2302
        %v2363 = vmul.f32 %v2302, %v2362
        %v2364 = vsub.f32 1.0, %v2363
        %v2365 = vmul.f32 %v2362, %v2364
        %v2366 = vadd.f32 %v2362, %v2365
        %vm2367 = vweird.f32 %v2302
        %vm2368 = vweird.f32 %v2362
        %vm2369 = vmor %vm2367, %vm2368
        %v2370 = vsel %vm2369, %v2362, %v2366
        %v2371 = vand.u32 2147483647, %v2302
        %vm2372 = vcmp.eq.f32.partialorder %v2371, 8.507059e+37
        %v2373 = vand.u32 %v2302, 2147483648
        %v2374 = vor.u32 1.1754944e-38, %v2373
        %v2375 = vsel %vm2372, %v2374, %v2370
        %v2376 = vmul.f32 1.0, %v2375
        %v2377 = vrcp.pop %v2303
        %v2378 = vmul.f32 %v2303, %v2377
        %v2379 = vsub.f32 1.0, %v2378
        %v2380 = vmul.f32 %v2377, %v2379
        %v2381 = vadd.f32 %v2377, %v2380
        %vm2382 = vweird.f32 %v2303
        %vm2383 = vweird.f32 %v2377
        %vm2384 = vmor %vm2382, %vm2383
        %v2385 = vsel %vm2384, %v2377, %v2381
        %v2386 = vand.u32 2147483647, %v2303
        %vm2387 = vcmp.eq.f32.partialorder %v2386, 8.507059e+37
        %v2388 = vand.u32 %v2303, 2147483648
        %v2389 = vor.u32 1.1754944e-38, %v2388
        %v2390 = vsel %vm2387, %v2389, %v2385
        %v2391 = vmul.f32 1.0, %v2390
        %v2392 = vrcp.pop %v2304
        %v2393 = vmul.f32 %v2304, %v2392
        %v2394 = vsub.f32 1.0, %v2393
        %v2395 = vmul.f32 %v2392, %v2394
        %v2396 = vadd.f32 %v2392, %v2395
        %vm2397 = vweird.f32 %v2304
        %vm2398 = vweird.f32 %v2392
        %vm2399 = vmor %vm2397, %vm2398
        %v2400 = vsel %vm2399, %v2392, %v2396
        %v2401 = vand.u32 2147483647, %v2304
        %vm2402 = vcmp.eq.f32.partialorder %v2401, 8.507059e+37
        %v2403 = vand.u32 %v2304, 2147483648
        %v2404 = vor.u32 1.1754944e-38, %v2403
        %v2405 = vsel %vm2402, %v2404, %v2400
        %v2406 = vmul.f32 1.0, %v2405
        %v2407 = vrcp.pop %v2305
        %v2408 = vmul.f32 %v2305, %v2407
        %v2409 = vsub.f32 1.0, %v2408
        %v2410 = vmul.f32 %v2407, %v2409
        %v2411 = vadd.f32 %v2407, %v2410
        %vm2412 = vweird.f32 %v2305
        %vm2413 = vweird.f32 %v2407
        %vm2414 = vmor %vm2412, %vm2413
        %v2415 = vsel %vm2414, %v2407, %v2411
        %v2416 = vand.u32 2147483647, %v2305
        %vm2417 = vcmp.eq.f32.partialorder %v2416, 8.507059e+37
        %v2418 = vand.u32 %v2305, 2147483648
        %v2419 = vor.u32 1.1754944e-38, %v2418
        %v2420 = vsel %vm2417, %v2419, %v2415
        %v2421 = vmul.f32 1.0, %v2420
        %v2422 = vrcp.pop %v2306
        %v2423 = vmul.f32 %v2306, %v2422
        %v2424 = vsub.f32 1.0, %v2423
        %v2425 = vmul.f32 %v2422, %v2424
        %v2426 = vadd.f32 %v2422, %v2425
        %vm2427 = vweird.f32 %v2306
        %vm2428 = vweird.f32 %v2422
        %vm2429 = vmor %vm2427, %vm2428
        %v2430 = vsel %vm2429, %v2422, %v2426
        %v2431 = vand.u32 2147483647, %v2306
        %vm2432 = vcmp.eq.f32.partialorder %v2431, 8.507059e+37
        %v2433 = vand.u32 %v2306, 2147483648
        %v2434 = vor.u32 1.1754944e-38, %v2433
        %v2435 = vsel %vm2432, %v2434, %v2430
        %v2436 = vmul.f32 1.0, %v2435
        %v2437 = vrcp.pop %v2307
        %v2438 = vmul.f32 %v2307, %v2437
        %v2439 = vsub.f32 1.0, %v2438
        %v2440 = vmul.f32 %v2437, %v2439
        %v2441 = vadd.f32 %v2437, %v2440
        %vm2442 = vweird.f32 %v2307
        %vm2443 = vweird.f32 %v2437
        %vm2444 = vmor %vm2442, %vm2443
        %v2445 = vsel %vm2444, %v2437, %v2441
        %v2446 = vand.u32 2147483647, %v2307
        %vm2447 = vcmp.eq.f32.partialorder %v2446, 8.507059e+37
        %v2448 = vand.u32 %v2307, 2147483648
        %v2449 = vor.u32 1.1754944e-38, %v2448
        %v2450 = vsel %vm2447, %v2449, %v2445
        %v2451 = vmul.f32 1.0, %v2450
        %v2452 = vrcp.pop %v2308
        %v2453 = vmul.f32 %v2308, %v2452
        %v2454 = vsub.f32 1.0, %v2453
        %v2455 = vmul.f32 %v2452, %v2454
        %v2456 = vadd.f32 %v2452, %v2455
        %vm2457 = vweird.f32 %v2308
        %vm2458 = vweird.f32 %v2452
        %vm2459 = vmor %vm2457, %vm2458
        %v2460 = vsel %vm2459, %v2452, %v2456
        %v2461 = vand.u32 2147483647, %v2308
        %vm2462 = vcmp.eq.f32.partialorder %v2461, 8.507059e+37
        %v2463 = vand.u32 %v2308, 2147483648
        %v2464 = vor.u32 1.1754944e-38, %v2463
        %v2465 = vsel %vm2462, %v2464, %v2460
        %v2466 = vmul.f32 1.0, %v2465
        %v2467 = vrcp.pop %v2309
        %v2468 = vmul.f32 %v2309, %v2467
        %v2469 = vsub.f32 1.0, %v2468
        %v2470 = vmul.f32 %v2467, %v2469
        %v2471 = vadd.f32 %v2467, %v2470
        %vm2472 = vweird.f32 %v2309
        %vm2473 = vweird.f32 %v2467
        %vm2474 = vmor %vm2472, %vm2473
        %v2475 = vsel %vm2474, %v2467, %v2471
        %v2476 = vand.u32 2147483647, %v2309
        %vm2477 = vcmp.eq.f32.partialorder %v2476, 8.507059e+37
        %v2478 = vand.u32 %v2309, 2147483648
        %v2479 = vor.u32 1.1754944e-38, %v2478
        %v2480 = vsel %vm2477, %v2479, %v2475
        %v2481 = vmul.f32 1.0, %v2480
        %v2482 = vrcp.pop %v2310
        %v2483 = vmul.f32 %v2310, %v2482
        %v2484 = vsub.f32 1.0, %v2483
        %v2485 = vmul.f32 %v2482, %v2484
        %v2486 = vadd.f32 %v2482, %v2485
        %vm2487 = vweird.f32 %v2310
        %vm2488 = vweird.f32 %v2482
        %vm2489 = vmor %vm2487, %vm2488
        %v2490 = vsel %vm2489, %v2482, %v2486
        %v2491 = vand.u32 2147483647, %v2310
        %vm2492 = vcmp.eq.f32.partialorder %v2491, 8.507059e+37
        %v2493 = vand.u32 %v2310, 2147483648
        %v2494 = vor.u32 1.1754944e-38, %v2493
        %v2495 = vsel %vm2492, %v2494, %v2490
        %v2496 = vmul.f32 1.0, %v2495
        %v2497 = vrcp.pop %v2311
        %v2498 = vmul.f32 %v2311, %v2497
        %v2499 = vsub.f32 1.0, %v2498
        %v2500 = vmul.f32 %v2497, %v2499
        %v2501 = vadd.f32 %v2497, %v2500
        %vm2502 = vweird.f32 %v2311
        %vm2503 = vweird.f32 %v2497
        %vm2504 = vmor %vm2502, %vm2503
        %v2505 = vsel %vm2504, %v2497, %v2501
        %v2506 = vand.u32 2147483647, %v2311
        %vm2507 = vcmp.eq.f32.partialorder %v2506, 8.507059e+37
        %v2508 = vand.u32 %v2311, 2147483648
        %v2509 = vor.u32 1.1754944e-38, %v2508
        %v2510 = vsel %vm2507, %v2509, %v2505
        %v2511 = vmul.f32 1.0, %v2510
        %v2512 = vrcp.pop %v2312
        %v2513 = vmul.f32 %v2312, %v2512
        %v2514 = vsub.f32 1.0, %v2513
        %v2515 = vmul.f32 %v2512, %v2514
        %v2516 = vadd.f32 %v2512, %v2515
        %vm2517 = vweird.f32 %v2312
        %vm2518 = vweird.f32 %v2512
        %vm2519 = vmor %vm2517, %vm2518
        %v2520 = vsel %vm2519, %v2512, %v2516
        %v2521 = vand.u32 2147483647, %v2312
        %vm2522 = vcmp.eq.f32.partialorder %v2521, 8.507059e+37
        %v2523 = vand.u32 %v2312, 2147483648
        %v2524 = vor.u32 1.1754944e-38, %v2523
        %v2525 = vsel %vm2522, %v2524, %v2520
        %v2526 = vmul.f32 1.0, %v2525
        %v2527 = vrcp.pop %v2313
        %v2528 = vmul.f32 %v2313, %v2527
        %v2529 = vsub.f32 1.0, %v2528
        %v2530 = vmul.f32 %v2527, %v2529
        %v2531 = vadd.f32 %v2527, %v2530
        %vm2532 = vweird.f32 %v2313
        %vm2533 = vweird.f32 %v2527
        %vm2534 = vmor %vm2532, %vm2533
        %v2535 = vsel %vm2534, %v2527, %v2531
        %v2536 = vand.u32 2147483647, %v2313
        %vm2537 = vcmp.eq.f32.partialorder %v2536, 8.507059e+37
        %v2538 = vand.u32 %v2313, 2147483648
        %v2539 = vor.u32 1.1754944e-38, %v2538
        %v2540 = vsel %vm2537, %v2539, %v2535
        %v2541 = vmul.f32 1.0, %v2540
        %v2542 = vrcp.pop %v2314
        %v2543 = vmul.f32 %v2314, %v2542
        %v2544 = vsub.f32 1.0, %v2543
        %v2545 = vmul.f32 %v2542, %v2544
        %v2546 = vadd.f32 %v2542, %v2545
        %vm2547 = vweird.f32 %v2314
        %vm2548 = vweird.f32 %v2542
        %vm2549 = vmor %vm2547, %vm2548
        %v2550 = vsel %vm2549, %v2542, %v2546
        %v2551 = vand.u32 2147483647, %v2314
        %vm2552 = vcmp.eq.f32.partialorder %v2551, 8.507059e+37
        %v2553 = vand.u32 %v2314, 2147483648
        %v2554 = vor.u32 1.1754944e-38, %v2553
        %v2555 = vsel %vm2552, %v2554, %v2550
        %v2556 = vmul.f32 1.0, %v2555
        %v2557 = vrcp.pop %v2315
        %v2558 = vmul.f32 %v2315, %v2557
        %v2559 = vsub.f32 1.0, %v2558
        %v2560 = vmul.f32 %v2557, %v2559
        %v2561 = vadd.f32 %v2557, %v2560
        %vm2562 = vweird.f32 %v2315
        %vm2563 = vweird.f32 %v2557
        %vm2564 = vmor %vm2562, %vm2563
        %v2565 = vsel %vm2564, %v2557, %v2561
        %v2566 = vand.u32 2147483647, %v2315
        %vm2567 = vcmp.eq.f32.partialorder %v2566, 8.507059e+37
        %v2568 = vand.u32 %v2315, 2147483648
        %v2569 = vor.u32 1.1754944e-38, %v2568
        %v2570 = vsel %vm2567, %v2569, %v2565
        %v2571 = vmul.f32 1.0, %v2570
        %v2572 = vrcp.pop %v2316
        %v2573 = vmul.f32 %v2316, %v2572
        %v2574 = vsub.f32 1.0, %v2573
        %v2575 = vmul.f32 %v2572, %v2574
        %v2576 = vadd.f32 %v2572, %v2575
        %vm2577 = vweird.f32 %v2316
        %vm2578 = vweird.f32 %v2572
        %vm2579 = vmor %vm2577, %vm2578
        %v2580 = vsel %vm2579, %v2572, %v2576
        %v2581 = vand.u32 2147483647, %v2316
        %vm2582 = vcmp.eq.f32.partialorder %v2581, 8.507059e+37
        %v2583 = vand.u32 %v2316, 2147483648
        %v2584 = vor.u32 1.1754944e-38, %v2583
        %v2585 = vsel %vm2582, %v2584, %v2580
        %v2586 = vmul.f32 1.0, %v2585
        %v2587 = vrcp.pop %v2317
        %v2588 = vmul.f32 %v2317, %v2587
        %v2589 = vsub.f32 1.0, %v2588
        %v2590 = vmul.f32 %v2587, %v2589
        %v2591 = vadd.f32 %v2587, %v2590
        %vm2592 = vweird.f32 %v2317
        %vm2593 = vweird.f32 %v2587
        %vm2594 = vmor %vm2592, %vm2593
        %v2595 = vsel %vm2594, %v2587, %v2591
        %v2596 = vand.u32 2147483647, %v2317
        %vm2597 = vcmp.eq.f32.partialorder %v2596, 8.507059e+37
        %v2598 = vand.u32 %v2317, 2147483648
        %v2599 = vor.u32 1.1754944e-38, %v2598
        %v2600 = vsel %vm2597, %v2599, %v2595
        %v2601 = vmul.f32 1.0, %v2600
        %v2602 = vrcp.pop %v2318
        %v2603 = vmul.f32 %v2318, %v2602
        %v2604 = vsub.f32 1.0, %v2603
        %v2605 = vmul.f32 %v2602, %v2604
        %v2606 = vadd.f32 %v2602, %v2605
        %vm2607 = vweird.f32 %v2318
        %vm2608 = vweird.f32 %v2602
        %vm2609 = vmor %vm2607, %vm2608
        %v2610 = vsel %vm2609, %v2602, %v2606
        %v2611 = vand.u32 2147483647, %v2318
        %vm2612 = vcmp.eq.f32.partialorder %v2611, 8.507059e+37
        %v2613 = vand.u32 %v2318, 2147483648
        %v2614 = vor.u32 1.1754944e-38, %v2613
        %v2615 = vsel %vm2612, %v2614, %v2610
        %v2616 = vmul.f32 1.0, %v2615
        %v2617 = vrcp.pop %v2319
        %v2618 = vmul.f32 %v2319, %v2617
        %v2619 = vsub.f32 1.0, %v2618
        %v2620 = vmul.f32 %v2617, %v2619
        %v2621 = vadd.f32 %v2617, %v2620
        %vm2622 = vweird.f32 %v2319
        %vm2623 = vweird.f32 %v2617
        %vm2624 = vmor %vm2622, %vm2623
        %v2625 = vsel %vm2624, %v2617, %v2621
        %v2626 = vand.u32 2147483647, %v2319
        %vm2627 = vcmp.eq.f32.partialorder %v2626, 8.507059e+37
        %v2628 = vand.u32 %v2319, 2147483648
        %v2629 = vor.u32 1.1754944e-38, %v2628
        %v2630 = vsel %vm2627, %v2629, %v2625
        %v2631 = vmul.f32 1.0, %v2630
        %v2632 = vrcp.pop %v2320
        %v2633 = vmul.f32 %v2320, %v2632
        %v2634 = vsub.f32 1.0, %v2633
        %v2635 = vmul.f32 %v2632, %v2634
        %v2636 = vadd.f32 %v2632, %v2635
        %vm2637 = vweird.f32 %v2320
        %vm2638 = vweird.f32 %v2632
        %vm2639 = vmor %vm2637, %vm2638
        %v2640 = vsel %vm2639, %v2632, %v2636
        %v2641 = vand.u32 2147483647, %v2320
        %vm2642 = vcmp.eq.f32.partialorder %v2641, 8.507059e+37
        %v2643 = vand.u32 %v2320, 2147483648
        %v2644 = vor.u32 1.1754944e-38, %v2643
        %v2645 = vsel %vm2642, %v2644, %v2640
        %v2646 = vmul.f32 1.0, %v2645
        %v2647 = vrcp.pop %v2321
        %v2648 = vmul.f32 %v2321, %v2647
        %v2649 = vsub.f32 1.0, %v2648
        %v2650 = vmul.f32 %v2647, %v2649
        %v2651 = vadd.f32 %v2647, %v2650
        %vm2652 = vweird.f32 %v2321
        %vm2653 = vweird.f32 %v2647
        %vm2654 = vmor %vm2652, %vm2653
        %v2655 = vsel %vm2654, %v2647, %v2651
        %v2656 = vand.u32 2147483647, %v2321
        %vm2657 = vcmp.eq.f32.partialorder %v2656, 8.507059e+37
        %v2658 = vand.u32 %v2321, 2147483648
        %v2659 = vor.u32 1.1754944e-38, %v2658
        %v2660 = vsel %vm2657, %v2659, %v2655
        %v2661 = vmul.f32 1.0, %v2660
        %v2662 = vrcp.pop %v2322
        %v2663 = vmul.f32 %v2322, %v2662
        %v2664 = vsub.f32 1.0, %v2663
        %v2665 = vmul.f32 %v2662, %v2664
        %v2666 = vadd.f32 %v2662, %v2665
        %vm2667 = vweird.f32 %v2322
        %vm2668 = vweird.f32 %v2662
        %vm2669 = vmor %vm2667, %vm2668
        %v2670 = vsel %vm2669, %v2662, %v2666
        %v2671 = vand.u32 2147483647, %v2322
        %vm2672 = vcmp.eq.f32.partialorder %v2671, 8.507059e+37
        %v2673 = vand.u32 %v2322, 2147483648
        %v2674 = vor.u32 1.1754944e-38, %v2673
        %v2675 = vsel %vm2672, %v2674, %v2670
        %v2676 = vmul.f32 1.0, %v2675
        %v2677 = vrcp.pop %v2323
        %v2678 = vmul.f32 %v2323, %v2677
        %v2679 = vsub.f32 1.0, %v2678
        %v2680 = vmul.f32 %v2677, %v2679
        %v2681 = vadd.f32 %v2677, %v2680
        %vm2682 = vweird.f32 %v2323
        %vm2683 = vweird.f32 %v2677
        %vm2684 = vmor %vm2682, %vm2683
        %v2685 = vsel %vm2684, %v2677, %v2681
        %v2686 = vand.u32 2147483647, %v2323
        %vm2687 = vcmp.eq.f32.partialorder %v2686, 8.507059e+37
        %v2688 = vand.u32 %v2323, 2147483648
        %v2689 = vor.u32 1.1754944e-38, %v2688
        %v2690 = vsel %vm2687, %v2689, %v2685
        %v2691 = vmul.f32 1.0, %v2690
        %v2692 = vrcp.pop %v2324
        %v2693 = vmul.f32 %v2324, %v2692
        %v2694 = vsub.f32 1.0, %v2693
        %v2695 = vmul.f32 %v2692, %v2694
        %v2696 = vadd.f32 %v2692, %v2695
        %vm2697 = vweird.f32 %v2324
        %vm2698 = vweird.f32 %v2692
        %vm2699 = vmor %vm2697, %vm2698
        %v2700 = vsel %vm2699, %v2692, %v2696
        %v2701 = vand.u32 2147483647, %v2324
        %vm2702 = vcmp.eq.f32.partialorder %v2701, 8.507059e+37
        %v2703 = vand.u32 %v2324, 2147483648
        %v2704 = vor.u32 1.1754944e-38, %v2703
        %v2705 = vsel %vm2702, %v2704, %v2700
        %v2706 = vmul.f32 1.0, %v2705
        %v2707 = vrcp.pop %v2325
        %v2708 = vmul.f32 %v2325, %v2707
        %v2709 = vsub.f32 1.0, %v2708
        %v2710 = vmul.f32 %v2707, %v2709
        %v2711 = vadd.f32 %v2707, %v2710
        %vm2712 = vweird.f32 %v2325
        %vm2713 = vweird.f32 %v2707
        %vm2714 = vmor %vm2712, %vm2713
        %v2715 = vsel %vm2714, %v2707, %v2711
        %v2716 = vand.u32 2147483647, %v2325
        %vm2717 = vcmp.eq.f32.partialorder %v2716, 8.507059e+37
        %v2718 = vand.u32 %v2325, 2147483648
        %v2719 = vor.u32 1.1754944e-38, %v2718
        %v2720 = vsel %vm2717, %v2719, %v2715
        %v2721 = vmul.f32 1.0, %v2720
        %v2722 = vrcp.pop %v2326
        %v2723 = vmul.f32 %v2326, %v2722
        %v2724 = vsub.f32 1.0, %v2723
        %v2725 = vmul.f32 %v2722, %v2724
        %v2726 = vadd.f32 %v2722, %v2725
        %vm2727 = vweird.f32 %v2326
        %vm2728 = vweird.f32 %v2722
        %vm2729 = vmor %vm2727, %vm2728
        %v2730 = vsel %vm2729, %v2722, %v2726
        %v2731 = vand.u32 2147483647, %v2326
        %vm2732 = vcmp.eq.f32.partialorder %v2731, 8.507059e+37
        %v2733 = vand.u32 %v2326, 2147483648
        %v2734 = vor.u32 1.1754944e-38, %v2733
        %v2735 = vsel %vm2732, %v2734, %v2730
        %v2736 = vmul.f32 1.0, %v2735
        %v2737 = vrcp.pop %v2327
        %v2738 = vmul.f32 %v2327, %v2737
        %v2739 = vsub.f32 1.0, %v2738
        %v2740 = vmul.f32 %v2737, %v2739
        %v2741 = vadd.f32 %v2737, %v2740
        %vm2742 = vweird.f32 %v2327
        %vm2743 = vweird.f32 %v2737
        %vm2744 = vmor %vm2742, %vm2743
        %v2745 = vsel %vm2744, %v2737, %v2741
        %v2746 = vand.u32 2147483647, %v2327
        %vm2747 = vcmp.eq.f32.partialorder %v2746, 8.507059e+37
        %v2748 = vand.u32 %v2327, 2147483648
        %v2749 = vor.u32 1.1754944e-38, %v2748
        %v2750 = vsel %vm2747, %v2749, %v2745
        %v2751 = vmul.f32 1.0, %v2750
        %v2752 = vrcp.pop %v2328
        %v2753 = vmul.f32 %v2328, %v2752
        %v2754 = vsub.f32 1.0, %v2753
        %v2755 = vmul.f32 %v2752, %v2754
        %v2756 = vadd.f32 %v2752, %v2755
        %vm2757 = vweird.f32 %v2328
        %vm2758 = vweird.f32 %v2752
        %vm2759 = vmor %vm2757, %vm2758
        %v2760 = vsel %vm2759, %v2752, %v2756
        %v2761 = vand.u32 2147483647, %v2328
        %vm2762 = vcmp.eq.f32.partialorder %v2761, 8.507059e+37
        %v2763 = vand.u32 %v2328, 2147483648
        %v2764 = vor.u32 1.1754944e-38, %v2763
        %v2765 = vsel %vm2762, %v2764, %v2760
        %v2766 = vmul.f32 1.0, %v2765
        %v2767 = vrcp.pop %v2329
        %v2768 = vmul.f32 %v2329, %v2767
        %v2769 = vsub.f32 1.0, %v2768
        %v2770 = vmul.f32 %v2767, %v2769
        %v2771 = vadd.f32 %v2767, %v2770
        %vm2772 = vweird.f32 %v2329
        %vm2773 = vweird.f32 %v2767
        %vm2774 = vmor %vm2772, %vm2773
        %v2775 = vsel %vm2774, %v2767, %v2771
        %v2776 = vand.u32 2147483647, %v2329
        %vm2777 = vcmp.eq.f32.partialorder %v2776, 8.507059e+37
        %v2778 = vand.u32 %v2329, 2147483648
        %v2779 = vor.u32 1.1754944e-38, %v2778
        %v2780 = vsel %vm2777, %v2779, %v2775
        %v2781 = vmul.f32 1.0, %v2780
        %v2782 = vrcp.pop %v2330
        %v2783 = vmul.f32 %v2330, %v2782
        %v2784 = vsub.f32 1.0, %v2783
        %v2785 = vmul.f32 %v2782, %v2784
        %v2786 = vadd.f32 %v2782, %v2785
        %vm2787 = vweird.f32 %v2330
        %vm2788 = vweird.f32 %v2782
        %vm2789 = vmor %vm2787, %vm2788
        %v2790 = vsel %vm2789, %v2782, %v2786
        %v2791 = vand.u32 2147483647, %v2330
        %vm2792 = vcmp.eq.f32.partialorder %v2791, 8.507059e+37
        %v2793 = vand.u32 %v2330, 2147483648
        %v2794 = vor.u32 1.1754944e-38, %v2793
        %v2795 = vsel %vm2792, %v2794, %v2790
        %v2796 = vmul.f32 1.0, %v2795
        %v2797 = vrcp.pop %v2331
        %v2798 = vmul.f32 %v2331, %v2797
        %v2799 = vsub.f32 1.0, %v2798
        %v2800 = vmul.f32 %v2797, %v2799
        %v2801 = vadd.f32 %v2797, %v2800
        %vm2802 = vweird.f32 %v2331
        %vm2803 = vweird.f32 %v2797
        %vm2804 = vmor %vm2802, %vm2803
        %v2805 = vsel %vm2804, %v2797, %v2801
        %v2806 = vand.u32 2147483647, %v2331
        %vm2807 = vcmp.eq.f32.partialorder %v2806, 8.507059e+37
        %v2808 = vand.u32 %v2331, 2147483648
        %v2809 = vor.u32 1.1754944e-38, %v2808
        %v2810 = vsel %vm2807, %v2809, %v2805
        %v2811 = vmul.f32 1.0, %v2810
        %vm2812 = vcmask 7168
        %2813 = vst.msk [vmem:[%s336] sm:$0xff] %vm2812, %v2346
        %2814 = vst.msk [vmem:[%s336 + $0x8] sm:$0xff] %vm2812, %v2361
        %2815 = vst.msk [vmem:[%s336 + $0x10] sm:$0xff] %vm2812, %v2376
        %2816 = vst.msk [vmem:[%s336 + $0x18] sm:$0xff] %vm2812, %v2391
        %2817 = vst.msk [vmem:[%s336 + $0x20] sm:$0xff] %vm2812, %v2406
        %2818 = vst.msk [vmem:[%s336 + $0x28] sm:$0xff] %vm2812, %v2421
        %2819 = vst.msk [vmem:[%s336 + $0x30] sm:$0xff] %vm2812, %v2436
        %2820 = vst.msk [vmem:[%s336 + $0x38] sm:$0xff] %vm2812, %v2451
        %2821 = vst.msk [vmem:[%s336 + $0x40] sm:$0xff] %vm2812, %v2466
        %2822 = vst.msk [vmem:[%s336 + $0x48] sm:$0xff] %vm2812, %v2481
        %2823 = vst.msk [vmem:[%s336 + $0x50] sm:$0xff] %vm2812, %v2496
        %2824 = vst.msk [vmem:[%s336 + $0x58] sm:$0xff] %vm2812, %v2511
        %2825 = vst.msk [vmem:[%s336 + $0x60] sm:$0xff] %vm2812, %v2526
        %2826 = vst.msk [vmem:[%s336 + $0x68] sm:$0xff] %vm2812, %v2541
        %2827 = vst.msk [vmem:[%s336 + $0x70] sm:$0xff] %vm2812, %v2556
        %2828 = vst.msk [vmem:[%s336 + $0x78] sm:$0xff] %vm2812, %v2571
        %2829 = vst.msk [vmem:[%s336 + $0x80] sm:$0xff] %vm2812, %v2586
        %2830 = vst.msk [vmem:[%s336 + $0x88] sm:$0xff] %vm2812, %v2601
        %2831 = vst.msk [vmem:[%s336 + $0x90] sm:$0xff] %vm2812, %v2616
        %2832 = vst.msk [vmem:[%s336 + $0x98] sm:$0xff] %vm2812, %v2631
        %2833 = vst.msk [vmem:[%s336 + $0xa0] sm:$0xff] %vm2812, %v2646
        %2834 = vst.msk [vmem:[%s336 + $0xa8] sm:$0xff] %vm2812, %v2661
        %2835 = vst.msk [vmem:[%s336 + $0xb0] sm:$0xff] %vm2812, %v2676
        %2836 = vst.msk [vmem:[%s336 + $0xb8] sm:$0xff] %vm2812, %v2691
        %2837 = vst.msk [vmem:[%s336 + $0xc0] sm:$0xff] %vm2812, %v2706
        %2838 = vst.msk [vmem:[%s336 + $0xc8] sm:$0xff] %vm2812, %v2721
        %2839 = vst.msk [vmem:[%s336 + $0xd0] sm:$0xff] %vm2812, %v2736
        %2840 = vst.msk [vmem:[%s336 + $0xd8] sm:$0xff] %vm2812, %v2751
        %2841 = vst.msk [vmem:[%s336 + $0xe0] sm:$0xff] %vm2812, %v2766
        %2842 = vst.msk [vmem:[%s336 + $0xe8] sm:$0xff] %vm2812, %v2781
        %2843 = vst.msk [vmem:[%s336 + $0xf0] sm:$0xff] %vm2812, %v2796
        %2844 = vst.msk [vmem:[%s336 + $0xf8] sm:$0xff] %vm2812, %v2811
        %s2845 = smul.u32 32, %s23
        %p2846 = scmp.lt.s32.totalorder %s2845, 63
        %s2847 = scalar_select %p2846, %s2845, 63
        %s2848 = smul.addr %s2847, 8
        %s2849 = scalar_lea.vmem %s7, %s2848
        // Predicated region
        $region61: #{tpu_custom_call.1} parent=47 // pred_check
          %p2850 = pneg %p193
        $region62: #{tpu_custom_call.1} parent=47 // pred_check_branch
          %2852 = sbr.rel (%p2850) target = $region64
        $region63: #{tpu_custom_call.1} parent=47 // pred_region
          %s2853 = smul.u32 32, %s23
        $region64: #{tpu_custom_call.1} parent=47 // pred_fallthru
          _
      $region48: #{tpu_custom_call.1} parent=5 // pred_fallthru
        _
      %p2854 = scmp.le.s32.totalorder 2, %s18
      // Predicated region
      $region65: #{tpu_custom_call.1} parent=5 // pred_check
        %p2855 = pneg %p2854
      $region66: #{tpu_custom_call.1} parent=5 // pred_check_branch
        %2857 = sbr.rel (%p2855) target = $region68
      $region67: #{tpu_custom_call.1} parent=5 // pred_region
        %s2858 = ssub.s32 %s18, 2
        // Predicated region
        $region69: #{tpu_custom_call.1} parent=67 // pred_check
          %p2859 = pneg %p199
        $region70: #{tpu_custom_call.1} parent=67 // pred_check_branch
          %2861 = sbr.rel (%p2859) target = $region72
        $region71: #{tpu_custom_call.1} parent=67 // pred_region
          %s2862 = smul.u32 32, %s24
          %p2863 = scmp.lt.s32.totalorder %s2862, 63
          %s2864 = scalar_select %p2863, %s2862, 63
          %s2865 = smul.addr %s2864, 8
          %s2866 = scalar_lea.vmem %s7, %s2865
        $region72: #{tpu_custom_call.1} parent=67 // pred_fallthru
          _
      $region68: #{tpu_custom_call.1} parent=5 // pred_fallthru
        _
    $region6: #{tpu_custom_call.1} parent=1 // loop_footer
      %s22 = sadd.s32 1, %s18
    $region7: #{tpu_custom_call.1} parent=1 // loop_footer_branch
      %17 = sbr.rel target = $region3
    $region8: #{tpu_custom_call.1} parent=1 // loop_exit
      _
    %2867 = vsyncpa [#allocation4], 1
    %s2868 = scalar_lea.sflag [#allocation4], 1
    %2869 = vsyncpa %s2868, 1
    %2870 = vsyncpa [#allocation6], 1

</llo_original>
